<compile_context>
chip_gen: v7x
topology: tpu7x:2x2x1
jax: 0.10.0
libtpu: 0.0.40
codegen_flags: <defaults>
</compile_context>

<pallas_src>
import functools

import jax
import jax.numpy as jnp
from jax.experimental import pallas as pl
from jax.experimental.pallas import tpu as pltpu

LN_EPS = 1e-5  # PyTorch nn.LayerNorm default


def _round_up(x, m):
    return (x + m - 1) // m * m


def _critic_kernel(
    # inputs (tiled)
    obs_ref, act_ref,
    # trunk params (trunk weight is fully resident in VMEM)
    w_tr_ref, b_tr_ref, ln_g_ref, ln_b_ref,
    # fused head params
    w1h_ref, w1a_ref, b1_ref,
    q1_w2_ref, q1_b2_ref, q2_w2_ref, q2_b2_ref,
    w3_ref, b3_ref,
    # output (lane-dense slab: lane 0 = q1, lane 1 = q2)
    out_ref,
    # scratch
    acc_ref,
    *, feature_dim, tile_k, hidden_p,
):
    k = pl.program_id(1)

    @pl.when(k == 0)
    def _init():
        acc_ref[...] = jnp.zeros_like(acc_ref)

    # Trunk matmul: obs K-slab against the matching slab of the *resident*
    # trunk weight (the full (Kp, Fp) weight is DMA'd into VMEM once).
    k_off = pl.multiple_of(k * tile_k, 128)
    w_slab = w_tr_ref[pl.ds(k_off, tile_k), :]
    acc_ref[...] += jnp.dot(obs_ref[...], w_slab,
                            preferred_element_type=jnp.float32)

    @pl.when(k == pl.num_programs(1) - 1)
    def _finalize():
        h = acc_ref[...] + b_tr_ref[...]
        tb, fp = h.shape

        # LayerNorm over the TRUE feature_dim lanes (biased variance, matching
        # PyTorch). Padded lanes of h are exactly zero (zero-padded weight and
        # bias), so the mean needs no mask; only `centered` is masked so the
        # padded lanes do not pollute the variance.
        mean = jnp.sum(h, axis=-1, keepdims=True) / feature_dim
        if feature_dim != fp:
            lane = jax.lax.broadcasted_iota(jnp.int32, (tb, fp), 1)
            centered = jnp.where(lane < feature_dim, h - mean, 0.0)
        else:
            centered = h - mean
        var = jnp.sum(centered * centered, axis=-1, keepdims=True) / feature_dim
        hn = centered * jax.lax.rsqrt(var + LN_EPS)
        hn = hn * ln_g_ref[...] + ln_b_ref[...]
        h = jnp.tanh(hn)

        # First Linear of BOTH heads: cat(h, action) @ W1 realized as two MXU
        # passes sharing one f32 accumulator (the action pass is a K=128 pad).
        z = jnp.dot(h.astype(w1h_ref.dtype), w1h_ref[...],
                    preferred_element_type=jnp.float32)
        z = z + jnp.dot(act_ref[...], w1a_ref[...],
                        preferred_element_type=jnp.float32)
        z = jnp.maximum(z + b1_ref[...], 0.0)

        x1 = z[:, :hidden_p]
        x2 = z[:, hidden_p:]
        x1 = jnp.maximum(
            jnp.dot(x1.astype(q1_w2_ref.dtype), q1_w2_ref[...],
                    preferred_element_type=jnp.float32) + q1_b2_ref[...], 0.0)
        x2 = jnp.maximum(
            jnp.dot(x2.astype(q2_w2_ref.dtype), q2_w2_ref[...],
                    preferred_element_type=jnp.float32) + q2_b2_ref[...], 0.0)

        # Final (H, 1) layers as VPU multiply + lane reduction (XLU), not an
        # N=1 MXU push. b3 scalars come from SMEM.
        q1 = jnp.sum(x1 * w3_ref[0:1, :], axis=-1, keepdims=True) + b3_ref[0, 0]
        q2 = jnp.sum(x2 * w3_ref[1:2, :], axis=-1, keepdims=True) + b3_ref[0, 1]

        # One lane-dense output block: lane 0 = q1, lane 1 = q2, rest zero.
        col = jax.lax.broadcasted_iota(jnp.int32, out_ref.shape, 1)
        out_ref[...] = jnp.where(col == 0, q1, jnp.where(col == 1, q2, 0.0))


def critic_forward(obs, action, params, *, compute_dtype=jnp.bfloat16,
                   tile_b=256, tile_k=1024):
    """obs: (B, repr_dim) f32, action: (B, action_dim) f32 -> (q1, q2): (B, 1).

    Note for v7x: pick tile_b so that ceil(B / tile_b) >= 2 when B is large
    enough, so the "parallel" batch axis spans both TensorCores.
    """
    B, repr_dim = obs.shape
    A = action.shape[-1]
    F = params["w_tr"].shape[1]
    H = params["q1_w2"].shape[0]

    Fp = _round_up(F, 128)
    Hp = _round_up(H, 128)
    Ap = _round_up(A, 128)
    OUT_LANES = 128

    TILE_B = min(_round_up(tile_b, 8), _round_up(B, 8))
    Bp = _round_up(B, TILE_B)
    num_b = Bp // TILE_B

    # K padding is computed against round_up(repr_dim, 128); prefer a tile
    # size that divides it exactly (no padded-K traffic) if one exists within
    # 2x of the requested size, otherwise pad K up to a multiple of TILE_K.
    Kp128 = _round_up(repr_dim, 128)
    TILE_K = min(_round_up(tile_k, 128), Kp128)
    for cand in range(TILE_K, max(TILE_K // 2, 128) - 1, -128):
        if Kp128 % cand == 0:
            TILE_K = cand
            break
    Kp = _round_up(Kp128, TILE_K)
    num_k = Kp // TILE_K

    f32 = jnp.float32

    def pad2(x, rows, cols):
        return jnp.pad(x, ((0, rows - x.shape[0]), (0, cols - x.shape[1])))

    # ---- pack / pad parameters (in a real training loop do this once) ------
    obs_p = pad2(obs.astype(f32), Bp, Kp).astype(compute_dtype)
    act_p = pad2(action.astype(f32), Bp, Ap).astype(compute_dtype)

    w_tr = pad2(params["w_tr"], Kp, Fp).astype(compute_dtype)
    b_tr = pad2(params["b_tr"].reshape(1, -1), 1, Fp)
    ln_g = pad2(params["ln_g"].reshape(1, -1), 1, Fp)
    ln_b = pad2(params["ln_b"].reshape(1, -1), 1, Fp)

    w1h_both = jnp.concatenate(
        [pad2(params["q1_w1h"], Fp, Hp), pad2(params["q2_w1h"], Fp, Hp)],
        axis=1).astype(compute_dtype)
    w1a_both = jnp.concatenate(
        [pad2(params["q1_w1a"], Ap, Hp), pad2(params["q2_w1a"], Ap, Hp)],
        axis=1).astype(compute_dtype)
    b1_both = jnp.concatenate(
        [pad2(params["q1_b1"].reshape(1, -1), 1, Hp),
         pad2(params["q2_b1"].reshape(1, -1), 1, Hp)], axis=1)

    q1_w2 = pad2(params["q1_w2"], Hp, Hp).astype(compute_dtype)
    q2_w2 = pad2(params["q2_w2"], Hp, Hp).astype(compute_dtype)
    q1_b2 = pad2(params["q1_b2"].reshape(1, -1), 1, Hp)
    q2_b2 = pad2(params["q2_b2"].reshape(1, -1), 1, Hp)

    w3_both = jnp.concatenate(
        [pad2(params["q1_w3"].T, 1, Hp), pad2(params["q2_w3"].T, 1, Hp)],
        axis=0).astype(f32)
    b3_both = jnp.concatenate(
        [params["q1_b3"].reshape(1, 1), params["q2_b3"].reshape(1, 1)],
        axis=1).astype(f32)

    # ---- accurate VMEM budget (default 2-deep pipelining per operand) ------
    cb = jnp.dtype(compute_dtype).itemsize
    n_buf = 2
    stream = n_buf * (TILE_B * TILE_K * cb          # obs tile
                      + TILE_B * Ap * cb            # action tile
                      + TILE_B * OUT_LANES * 4)     # output tile
    weights = n_buf * (Kp * Fp * cb                 # resident trunk weight
                       + (Fp + Ap) * 2 * Hp * cb    # fused first-layer weights
                       + 2 * Hp * Hp * cb)          # two W2 blocks
    smalls = n_buf * (3 * Fp + 6 * Hp) * 4          # biases / LN / W3 rows
    scratch = TILE_B * Fp * 4
    est = stream + weights + smalls + scratch
    vmem_limit = int(max(min(int(est * 1.5), 48 * 2**20),
                         est + (2 << 20), 16 * 2**20))

    const = lambda i, k: (0, 0)
    in_specs = [
        pl.BlockSpec((TILE_B, TILE_K), lambda i, k: (i, k)),   # obs
        pl.BlockSpec((TILE_B, Ap), lambda i, k: (i, 0)),       # action (padded)
        pl.BlockSpec((Kp, Fp), const),                         # trunk W (resident)
        pl.BlockSpec((1, Fp), const),                          # trunk b
        pl.BlockSpec((1, Fp), const),                          # ln gamma
        pl.BlockSpec((1, Fp), const),                          # ln beta
        pl.BlockSpec((Fp, 2 * Hp), const),                     # W1h (both heads)
        pl.BlockSpec((Ap, 2 * Hp), const),                     # W1a (both heads)
        pl.BlockSpec((1, 2 * Hp), const),                      # b1  (both heads)
        pl.BlockSpec((Hp, Hp), const),                         # q1 W2
        pl.BlockSpec((1, Hp), const),                          # q1 b2
        pl.BlockSpec((Hp, Hp), const),                         # q2 W2
        pl.BlockSpec((1, Hp), const),                          # q2 b2
        pl.BlockSpec((2, Hp), const),                          # W3 rows (both)
        pl.BlockSpec((1, 2), const,
                     memory_space=pltpu.MemorySpace.SMEM),     # b3 scalars
    ]
    out_spec = pl.BlockSpec((TILE_B, OUT_LANES), lambda i, k: (i, 0))

    kernel = functools.partial(_critic_kernel, feature_dim=F, tile_k=TILE_K,
                               hidden_p=Hp)

    out = pl.pallas_call(
        kernel,
        out_shape=jax.ShapeDtypeStruct((Bp, OUT_LANES), jnp.float32),
        grid=(num_b, num_k),
        in_specs=in_specs,
        out_specs=out_spec,
        scratch_shapes=[pltpu.VMEM((TILE_B, Fp), jnp.float32)],
        compiler_params=pltpu.CompilerParams(
            dimension_semantics=("parallel", "arbitrary"),
            vmem_limit_bytes=vmem_limit),
    )(obs_p, act_p, w_tr, b_tr, ln_g, ln_b,
      w1h_both, w1a_both, b1_both,
      q1_w2, q1_b2, q2_w2, q2_b2, w3_both, b3_both)

    return out[:B, 0:1], out[:B, 1:2]


def init_params(key, repr_dim, action_dim, feature_dim, hidden_dim):
    """Deterministic synthetic params (shapes match the PyTorch module)."""
    ks = jax.random.split(key, 16)

    def lin_w(k, fan_in, fan_out):
        return jax.random.normal(k, (fan_in, fan_out), jnp.float32) / jnp.sqrt(fan_in)

    def lin_b(k, fan_out):
        return jax.random.normal(k, (fan_out,), jnp.float32) * 0.01

    p = {
        "w_tr": lin_w(ks[0], repr_dim, feature_dim),
        "b_tr": lin_b(ks[1], feature_dim),
        "ln_g": jnp.ones((feature_dim,), jnp.float32),
        "ln_b": jnp.zeros((feature_dim,), jnp.float32),
    }
    idx = 2
    for name in ("q1", "q2"):
        w1 = lin_w(ks[idx], feature_dim + action_dim, hidden_dim); idx += 1
        p[f"{name}_w1h"] = w1[:feature_dim]
        p[f"{name}_w1a"] = w1[feature_dim:]
        p[f"{name}_b1"] = lin_b(ks[idx], hidden_dim); idx += 1
        p[f"{name}_w2"] = lin_w(ks[idx], hidden_dim, hidden_dim); idx += 1
        p[f"{name}_b2"] = lin_b(ks[idx], hidden_dim); idx += 1
        p[f"{name}_w3"] = lin_w(ks[idx], hidden_dim, 1); idx += 1
        p[f"{name}_b3"] = lin_b(ks[idx], 1); idx += 1
    return p


def critic_reference(obs, action, p, *, compute_dtype=jnp.float32):
    """Pure-JAX reference of the PyTorch forward (matching matmul dtype)."""
    def mm(x, w):
        return jnp.dot(x.astype(compute_dtype), w.astype(compute_dtype),
                       preferred_element_type=jnp.float32)

    h = mm(obs, p["w_tr"]) + p["b_tr"][None, :]
    mean = h.mean(-1, keepdims=True)
    var = ((h - mean) ** 2).mean(-1, keepdims=True)
    h = (h - mean) * jax.lax.rsqrt(var + LN_EPS)
    h = h * p["ln_g"][None, :] + p["ln_b"][None, :]
    h = jnp.tanh(h)

    def q_head(prefix):
        x = (mm(h, p[f"{prefix}_w1h"]) + mm(action, p[f"{prefix}_w1a"])
             + p[f"{prefix}_b1"][None, :])
        x = jax.nn.relu(x)
        x = jax.nn.relu(mm(x, p[f"{prefix}_w2"]) + p[f"{prefix}_b2"][None, :])
        return x @ p[f"{prefix}_w3"] + p[f"{prefix}_b3"][None, :]

    return q_head("q1"), q_head("q2")


if __name__ == "__main__":
    # Small shapes consistent with the module (repr_dim > tile_k in the f32
    # test to exercise K-tiled trunk accumulation; feature/hidden pad to 128).
    B, REPR_DIM, ACTION_DIM, FEATURE_DIM, HIDDEN_DIM = 8, 320, 4, 50, 96

    key = jax.random.PRNGKey(0)
    k_obs, k_act, k_par = jax.random.split(key, 3)
    obs = jax.random.normal(k_obs, (B, REPR_DIM), jnp.float32)
    action = jax.random.uniform(k_act, (B, ACTION_DIM), jnp.float32,
                                minval=-1.0, maxval=1.0)
    params = init_params(k_par, REPR_DIM, ACTION_DIM, FEATURE_DIM, HIDDEN_DIM)

    # f32 matmul path with small K tiles (multi-step accumulation).
    q1, q2 = critic_forward(obs, action, params,
                            compute_dtype=jnp.float32, tile_k=128)
    jax.block_until_ready((q1, q2))
    r1, r2 = critic_reference(obs, action, params, compute_dtype=jnp.float32)
    assert q1.shape == (B, 1) and q2.shape == (B, 1)
    assert jnp.allclose(q1, r1, atol=2e-2, rtol=2e-2)
    assert jnp.allclose(q2, r2, atol=2e-2, rtol=2e-2)

    # bf16 matmul-operand path (default; f32 accumulation / f32 elementwise),
    # default tile sizes (single K step here).
    q1b, q2b = critic_forward(obs, action, params,
                              compute_dtype=jnp.bfloat16)
    jax.block_until_ready((q1b, q2b))
    rb1, rb2 = critic_reference(obs, action, params, compute_dtype=jnp.bfloat16)
    assert jnp.allclose(q1b, rb1, atol=2e-2, rtol=2e-2)
    assert jnp.allclose(q2b, rb2, atol=2e-2, rtol=2e-2)

    print("KERNEL_OK")
</pallas_src>

<mosaic_0001>
module attributes {stable_mosaic.version = 11 : i64} {
  func.func @_critic_kernel(%arg0: i32, %arg1: i32, %arg2: memref<8x128xf32, #tpu.memory_space<vmem>>, %arg3: memref<8x128xf32, #tpu.memory_space<vmem>>, %arg4: memref<384x128xf32, #tpu.memory_space<vmem>>, %arg5: memref<1x128xf32, #tpu.memory_space<vmem>>, %arg6: memref<1x128xf32, #tpu.memory_space<vmem>>, %arg7: memref<1x128xf32, #tpu.memory_space<vmem>>, %arg8: memref<128x256xf32, #tpu.memory_space<vmem>>, %arg9: memref<128x256xf32, #tpu.memory_space<vmem>>, %arg10: memref<1x256xf32, #tpu.memory_space<vmem>>, %arg11: memref<128x128xf32, #tpu.memory_space<vmem>>, %arg12: memref<1x128xf32, #tpu.memory_space<vmem>>, %arg13: memref<128x128xf32, #tpu.memory_space<vmem>>, %arg14: memref<1x128xf32, #tpu.memory_space<vmem>>, %arg15: memref<2x128xf32, #tpu.memory_space<vmem>>, %arg16: memref<1x2xf32, #tpu.memory_space<smem>>, %arg17: memref<8x128xf32, #tpu.memory_space<vmem>>, %arg18: memref<8x128xf32, #tpu.memory_space<vmem>>) attributes {dimension_semantics = [#tpu.dimension_semantics<parallel>, #tpu.dimension_semantics<arbitrary>], iteration_bounds = array<i64: 1, 3>, scalar_prefetch = 0 : i64, scratch_operands = 1 : i64, tpu.core_type = #tpu.core_type<tc>, window_params = [{transform_indices = @transform_0, window_bounds = array<i64: 8, 128>}, {transform_indices = @transform_1, window_bounds = array<i64: 8, 128>}, {pipeline_mode = #tpu.pipeline_mode<synchronous>, transform_indices = @transform_2, window_bounds = array<i64: 384, 128>}, {pipeline_mode = #tpu.pipeline_mode<synchronous>, transform_indices = @transform_3, window_bounds = array<i64: 1, 128>}, {pipeline_mode = #tpu.pipeline_mode<synchronous>, transform_indices = @transform_4, window_bounds = array<i64: 1, 128>}, {pipeline_mode = #tpu.pipeline_mode<synchronous>, transform_indices = @transform_5, window_bounds = array<i64: 1, 128>}, {pipeline_mode = #tpu.pipeline_mode<synchronous>, transform_indices = @transform_6, window_bounds = array<i64: 128, 256>}, {pipeline_mode = #tpu.pipeline_mode<synchronous>, transform_indices = @transform_7, window_bounds = array<i64: 128, 256>}, {pipeline_mode = #tpu.pipeline_mode<synchronous>, transform_indices = @transform_8, window_bounds = array<i64: 1, 256>}, {pipeline_mode = #tpu.pipeline_mode<synchronous>, transform_indices = @transform_9, window_bounds = array<i64: 128, 128>}, {pipeline_mode = #tpu.pipeline_mode<synchronous>, transform_indices = @transform_10, window_bounds = array<i64: 1, 128>}, {pipeline_mode = #tpu.pipeline_mode<synchronous>, transform_indices = @transform_11, window_bounds = array<i64: 128, 128>}, {pipeline_mode = #tpu.pipeline_mode<synchronous>, transform_indices = @transform_12, window_bounds = array<i64: 1, 128>}, {pipeline_mode = #tpu.pipeline_mode<synchronous>, transform_indices = @transform_13, window_bounds = array<i64: 2, 128>}, {transform_indices = @transform_14, window_bounds = array<i64: 1, 2>}, {transform_indices = @transform_15, window_bounds = array<i64: 8, 128>}]} {
    %c0_i32 = arith.constant 0 : i32
    %0 = arith.cmpi eq, %arg1, %c0_i32 : i32
    %1 = arith.extui %0 : i1 to i32
    %c0_i32_0 = arith.constant 0 : i32
    %2 = arith.cmpi ne, %1, %c0_i32_0 : i32
    scf.if %2 {
      %cst_8 = arith.constant 0.000000e+00 : f32
      %15 = vector.broadcast %cst_8 : f32 to vector<8x128xf32>
      %c0_9 = arith.constant 0 : index
      %c0_10 = arith.constant 0 : index
      %16 = vector.load %arg18[%c0_9, %c0_10] : memref<8x128xf32, #tpu.memory_space<vmem>>, vector<8x128xf32>
      tpu.vector_store %arg18[%c0_9, %c0_10], %15 {strides = array<i32>} : memref<8x128xf32, #tpu.memory_space<vmem>>, vector<8x128xf32>,
    } else {
    }
    %c128_i32 = arith.constant 128 : i32
    %3 = arith.muli %arg1, %c128_i32 : i32
    %4 = tpu.assume_multiple %3, 128 : i32
    %5 = arith.index_cast %4 : i32 to index
    %c0 = arith.constant 0 : index
    %6 = vector.load %arg4[%5, %c0] : memref<384x128xf32, #tpu.memory_space<vmem>>, vector<128x128xf32>
    %c0_1 = arith.constant 0 : index
    %c0_2 = arith.constant 0 : index
    %7 = vector.load %arg18[%c0_1, %c0_2] : memref<8x128xf32, #tpu.memory_space<vmem>>, vector<8x128xf32>
    %c0_3 = arith.constant 0 : index
    %c0_4 = arith.constant 0 : index
    %8 = vector.load %arg2[%c0_3, %c0_4] : memref<8x128xf32, #tpu.memory_space<vmem>>, vector<8x128xf32>
    %cst = arith.constant dense<0.000000e+00> : vector<8x128xf32>
    %9 = tpu.matmul %8, %6, %cst {dimension_numbers = #tpu.dot_dimension_numbers<[1], [0], [0], [1], [0, 0, 1, 1], [], []>} : vector<8x128xf32>, vector<128x128xf32>, vector<8x128xf32> -> vector<8x128xf32>
    %10 = arith.addf %7, %9 : vector<8x128xf32>
    %c0_5 = arith.constant 0 : index
    %c0_6 = arith.constant 0 : index
    %11 = vector.load %arg18[%c0_5, %c0_6] : memref<8x128xf32, #tpu.memory_space<vmem>>, vector<8x128xf32>
    tpu.vector_store %arg18[%c0_5, %c0_6], %10 {strides = array<i32>} : memref<8x128xf32, #tpu.memory_space<vmem>>, vector<8x128xf32>,
    %c2_i32 = arith.constant 2 : i32
    %12 = arith.cmpi eq, %arg1, %c2_i32 : i32
    %13 = arith.extui %12 : i1 to i32
    %c0_i32_7 = arith.constant 0 : i32
    %14 = arith.cmpi ne, %13, %c0_i32_7 : i32
    scf.if %14 {
      %c0_8 = arith.constant 0 : index
      %c0_9 = arith.constant 0 : index
      %15 = vector.load %arg18[%c0_8, %c0_9] : memref<8x128xf32, #tpu.memory_space<vmem>>, vector<8x128xf32>
      %c0_10 = arith.constant 0 : index
      %c0_11 = arith.constant 0 : index
      %16 = vector.load %arg5[%c0_10, %c0_11] : memref<1x128xf32, #tpu.memory_space<vmem>>, vector<1x128xf32>
      %17 = vector.broadcast %16 : vector<1x128xf32> to vector<8x128xf32>
      %18 = arith.addf %15, %17 : vector<8x128xf32>
      %cst_12 = arith.constant dense<0.000000e+00> : vector<8xf32>
      %19 = vector.multi_reduction <add>, %18, %cst_12 [1] : vector<8x128xf32> to vector<8xf32>
      %20 = vector.shape_cast %19 : vector<8xf32> to vector<8x1xf32>
      %cst_13 = arith.constant 5.000000e+01 : f32
      %21 = vector.broadcast %cst_13 : f32 to vector<8x1xf32>
      %22 = arith.divf %20, %21 : vector<8x1xf32>
      %23 = tpu.iota {dimensions = array<i32: 1>} : vector<8x128xi32>
      %c50_i32 = arith.constant 50 : i32
      %24 = vector.broadcast %c50_i32 : i32 to vector<8x128xi32>
      %25 = arith.cmpi slt, %23, %24 : vector<8x128xi32>
      %26 = vector.broadcast %22 : vector<8x1xf32> to vector<8x128xf32>
      %27 = arith.subf %18, %26 : vector<8x128xf32>
      %cst_14 = arith.constant 0.000000e+00 : f32
      %28 = vector.broadcast %cst_14 : f32 to vector<8x128xf32>
      %29 = arith.select %25, %27, %28 : vector<8x128xi1>, vector<8x128xf32>
      %30 = arith.mulf %29, %29 : vector<8x128xf32>
      %cst_15 = arith.constant dense<0.000000e+00> : vector<8xf32>
      %31 = vector.multi_reduction <add>, %30, %cst_15 [1] : vector<8x128xf32> to vector<8xf32>
      %32 = vector.shape_cast %31 : vector<8xf32> to vector<8x1xf32>
      %cst_16 = arith.constant 5.000000e+01 : f32
      %33 = vector.broadcast %cst_16 : f32 to vector<8x1xf32>
      %34 = arith.divf %32, %33 : vector<8x1xf32>
      %cst_17 = arith.constant 9.99999974E-6 : f32
      %35 = vector.broadcast %cst_17 : f32 to vector<8x1xf32>
      %36 = arith.addf %34, %35 : vector<8x1xf32>
      %37 = math.rsqrt %36 : vector<8x1xf32>
      %38 = vector.broadcast %37 : vector<8x1xf32> to vector<8x128xf32>
      %39 = arith.mulf %29, %38 : vector<8x128xf32>
      %c0_18 = arith.constant 0 : index
      %c0_19 = arith.constant 0 : index
      %40 = vector.load %arg6[%c0_18, %c0_19] : memref<1x128xf32, #tpu.memory_space<vmem>>, vector<1x128xf32>
      %41 = vector.broadcast %40 : vector<1x128xf32> to vector<8x128xf32>
      %42 = arith.mulf %39, %41 : vector<8x128xf32>
      %c0_20 = arith.constant 0 : index
      %c0_21 = arith.constant 0 : index
      %43 = vector.load %arg7[%c0_20, %c0_21] : memref<1x128xf32, #tpu.memory_space<vmem>>, vector<1x128xf32>
      %44 = vector.broadcast %43 : vector<1x128xf32> to vector<8x128xf32>
      %45 = arith.addf %42, %44 : vector<8x128xf32>
      %46 = math.tanh %45 : vector<8x128xf32>
      %c0_22 = arith.constant 0 : index
      %c0_23 = arith.constant 0 : index
      %47 = vector.load %arg8[%c0_22, %c0_23] : memref<128x256xf32, #tpu.memory_space<vmem>>, vector<128x256xf32>
      %cst_24 = arith.constant dense<0.000000e+00> : vector<8x256xf32>
      %48 = tpu.matmul %46, %47, %cst_24 {dimension_numbers = #tpu.dot_dimension_numbers<[1], [0], [0], [1], [0, 0, 1, 1], [], []>} : vector<8x128xf32>, vector<128x256xf32>, vector<8x256xf32> -> vector<8x256xf32>
      %c0_25 = arith.constant 0 : index
      %c0_26 = arith.constant 0 : index
      %49 = vector.load %arg3[%c0_25, %c0_26] : memref<8x128xf32, #tpu.memory_space<vmem>>, vector<8x128xf32>
      %c0_27 = arith.constant 0 : index
      %c0_28 = arith.constant 0 : index
      %50 = vector.load %arg9[%c0_27, %c0_28] : memref<128x256xf32, #tpu.memory_space<vmem>>, vector<128x256xf32>
      %cst_29 = arith.constant dense<0.000000e+00> : vector<8x256xf32>
      %51 = tpu.matmul %49, %50, %cst_29 {dimension_numbers = #tpu.dot_dimension_numbers<[1], [0], [0], [1], [0, 0, 1, 1], [], []>} : vector<8x128xf32>, vector<128x256xf32>, vector<8x256xf32> -> vector<8x256xf32>
      %52 = arith.addf %48, %51 : vector<8x256xf32>
      %c0_30 = arith.constant 0 : index
      %c0_31 = arith.constant 0 : index
      %53 = vector.load %arg10[%c0_30, %c0_31] : memref<1x256xf32, #tpu.memory_space<vmem>>, vector<1x256xf32>
      %54 = vector.broadcast %53 : vector<1x256xf32> to vector<8x256xf32>
      %55 = arith.addf %52, %54 : vector<8x256xf32>
      %cst_32 = arith.constant 0.000000e+00 : f32
      %56 = vector.broadcast %cst_32 : f32 to vector<8x256xf32>
      %57 = arith.maximumf %55, %56 : vector<8x256xf32>
      %58 = vector.extract_strided_slice %57 {offsets = [0, 0], sizes = [8, 128], strides = [1, 1]} : vector<8x256xf32> to vector<8x128xf32>
      %59 = vector.extract_strided_slice %57 {offsets = [0, 128], sizes = [8, 128], strides = [1, 1]} : vector<8x256xf32> to vector<8x128xf32>
      %c0_33 = arith.constant 0 : index
      %c0_34 = arith.constant 0 : index
      %60 = vector.load %arg11[%c0_33, %c0_34] : memref<128x128xf32, #tpu.memory_space<vmem>>, vector<128x128xf32>
      %cst_35 = arith.constant dense<0.000000e+00> : vector<8x128xf32>
      %61 = tpu.matmul %58, %60, %cst_35 {dimension_numbers = #tpu.dot_dimension_numbers<[1], [0], [0], [1], [0, 0, 1, 1], [], []>} : vector<8x128xf32>, vector<128x128xf32>, vector<8x128xf32> -> vector<8x128xf32>
      %c0_36 = arith.constant 0 : index
      %c0_37 = arith.constant 0 : index
      %62 = vector.load %arg12[%c0_36, %c0_37] : memref<1x128xf32, #tpu.memory_space<vmem>>, vector<1x128xf32>
      %63 = vector.broadcast %62 : vector<1x128xf32> to vector<8x128xf32>
      %64 = arith.addf %61, %63 : vector<8x128xf32>
      %cst_38 = arith.constant 0.000000e+00 : f32
      %65 = vector.broadcast %cst_38 : f32 to vector<8x128xf32>
      %66 = arith.maximumf %64, %65 : vector<8x128xf32>
      %c0_39 = arith.constant 0 : index
      %c0_40 = arith.constant 0 : index
      %67 = vector.load %arg13[%c0_39, %c0_40] : memref<128x128xf32, #tpu.memory_space<vmem>>, vector<128x128xf32>
      %cst_41 = arith.constant dense<0.000000e+00> : vector<8x128xf32>
      %68 = tpu.matmul %59, %67, %cst_41 {dimension_numbers = #tpu.dot_dimension_numbers<[1], [0], [0], [1], [0, 0, 1, 1], [], []>} : vector<8x128xf32>, vector<128x128xf32>, vector<8x128xf32> -> vector<8x128xf32>
      %c0_42 = arith.constant 0 : index
      %c0_43 = arith.constant 0 : index
      %69 = vector.load %arg14[%c0_42, %c0_43] : memref<1x128xf32, #tpu.memory_space<vmem>>, vector<1x128xf32>
      %70 = vector.broadcast %69 : vector<1x128xf32> to vector<8x128xf32>
      %71 = arith.addf %68, %70 : vector<8x128xf32>
      %cst_44 = arith.constant 0.000000e+00 : f32
      %72 = vector.broadcast %cst_44 : f32 to vector<8x128xf32>
      %73 = arith.maximumf %71, %72 : vector<8x128xf32>
      %c0_45 = arith.constant 0 : index
      %c0_46 = arith.constant 0 : index
      %74 = vector.load %arg15[%c0_45, %c0_46] : memref<2x128xf32, #tpu.memory_space<vmem>>, vector<1x128xf32>
      %75 = vector.broadcast %74 : vector<1x128xf32> to vector<8x128xf32>
      %76 = arith.mulf %66, %75 : vector<8x128xf32>
      %cst_47 = arith.constant dense<0.000000e+00> : vector<8xf32>
      %77 = vector.multi_reduction <add>, %76, %cst_47 [1] : vector<8x128xf32> to vector<8xf32>
      %78 = vector.shape_cast %77 : vector<8xf32> to vector<8x1xf32>
      %c0_48 = arith.constant 0 : index
      %c0_49 = arith.constant 0 : index
      %79 = memref.load %arg16[%c0_48, %c0_49] : memref<1x2xf32, #tpu.memory_space<smem>>
      %80 = vector.broadcast %79 : f32 to vector<8x1xf32>
      %81 = arith.addf %78, %80 : vector<8x1xf32>
      %c1 = arith.constant 1 : index
      %c0_50 = arith.constant 0 : index
      %82 = vector.load %arg15[%c1, %c0_50] : memref<2x128xf32, #tpu.memory_space<vmem>>, vector<1x128xf32>
      %83 = vector.broadcast %82 : vector<1x128xf32> to vector<8x128xf32>
      %84 = arith.mulf %73, %83 : vector<8x128xf32>
      %cst_51 = arith.constant dense<0.000000e+00> : vector<8xf32>
      %85 = vector.multi_reduction <add>, %84, %cst_51 [1] : vector<8x128xf32> to vector<8xf32>
      %86 = vector.shape_cast %85 : vector<8xf32> to vector<8x1xf32>
      %c0_52 = arith.constant 0 : index
      %c1_53 = arith.constant 1 : index
      %87 = memref.load %arg16[%c0_52, %c1_53] : memref<1x2xf32, #tpu.memory_space<smem>>
      %88 = vector.broadcast %87 : f32 to vector<8x1xf32>
      %89 = arith.addf %86, %88 : vector<8x1xf32>
      %90 = tpu.iota {dimensions = array<i32: 1>} : vector<8x128xi32>
      %c0_i32_54 = arith.constant 0 : i32
      %91 = vector.broadcast %c0_i32_54 : i32 to vector<8x128xi32>
      %92 = arith.cmpi eq, %90, %91 : vector<8x128xi32>
      %c1_i32 = arith.constant 1 : i32
      %93 = vector.broadcast %c1_i32 : i32 to vector<8x128xi32>
      %94 = arith.cmpi eq, %90, %93 : vector<8x128xi32>
      %cst_55 = arith.constant 0.000000e+00 : f32
      %95 = vector.shape_cast %89 : vector<8x1xf32> to vector<8x1xf32>
      %96 = vector.broadcast %95 : vector<8x1xf32> to vector<8x128xf32>
      %97 = vector.broadcast %cst_55 : f32 to vector<8x128xf32>
      %98 = arith.select %94, %96, %97 : vector<8x128xi1>, vector<8x128xf32>
      %99 = vector.shape_cast %81 : vector<8x1xf32> to vector<8x1xf32>
      %100 = vector.broadcast %99 : vector<8x1xf32> to vector<8x128xf32>
      %101 = arith.select %92, %100, %98 : vector<8x128xi1>, vector<8x128xf32>
      %c0_56 = arith.constant 0 : index
      %c0_57 = arith.constant 0 : index
      %102 = vector.load %arg17[%c0_56, %c0_57] : memref<8x128xf32, #tpu.memory_space<vmem>>, vector<8x128xf32>
      tpu.vector_store %arg17[%c0_56, %c0_57], %101 {strides = array<i32>} : memref<8x128xf32, #tpu.memory_space<vmem>>, vector<8x128xf32>,
    } else {
    }
    return
  }
  func.func @transform_0(%arg0: i32, %arg1: i32) -> (i32, i32) {
    %c0_i32 = arith.constant 0 : i32
    return %arg0, %arg1 : i32, i32
  }
  func.func @transform_1(%arg0: i32, %arg1: i32) -> (i32, i32) {
    %c0_i32 = arith.constant 0 : i32
    %c0_i32_0 = arith.constant 0 : i32
    return %arg0, %c0_i32 : i32, i32
  }
  func.func @transform_2(%arg0: i32, %arg1: i32) -> (i32, i32) {
    %c0_i32 = arith.constant 0 : i32
    %c0_i32_0 = arith.constant 0 : i32
    %c0_i32_1 = arith.constant 0 : i32
    return %c0_i32, %c0_i32_0 : i32, i32
  }
  func.func @transform_3(%arg0: i32, %arg1: i32) -> (i32, i32) {
    %c0_i32 = arith.constant 0 : i32
    %c0_i32_0 = arith.constant 0 : i32
    %c0_i32_1 = arith.constant 0 : i32
    return %c0_i32, %c0_i32_0 : i32, i32
  }
  func.func @transform_4(%arg0: i32, %arg1: i32) -> (i32, i32) {
    %c0_i32 = arith.constant 0 : i32
    %c0_i32_0 = arith.constant 0 : i32
    %c0_i32_1 = arith.constant 0 : i32
    return %c0_i32, %c0_i32_0 : i32, i32
  }
  func.func @transform_5(%arg0: i32, %arg1: i32) -> (i32, i32) {
    %c0_i32 = arith.constant 0 : i32
    %c0_i32_0 = arith.constant 0 : i32
    %c0_i32_1 = arith.constant 0 : i32
    return %c0_i32, %c0_i32_0 : i32, i32
  }
  func.func @transform_6(%arg0: i32, %arg1: i32) -> (i32, i32) {
    %c0_i32 = arith.constant 0 : i32
    %c0_i32_0 = arith.constant 0 : i32
    %c0_i32_1 = arith.constant 0 : i32
    return %c0_i32, %c0_i32_0 : i32, i32
  }
  func.func @transform_7(%arg0: i32, %arg1: i32) -> (i32, i32) {
    %c0_i32 = arith.constant 0 : i32
    %c0_i32_0 = arith.constant 0 : i32
    %c0_i32_1 = arith.constant 0 : i32
    return %c0_i32, %c0_i32_0 : i32, i32
  }
  func.func @transform_8(%arg0: i32, %arg1: i32) -> (i32, i32) {
    %c0_i32 = arith.constant 0 : i32
    %c0_i32_0 = arith.constant 0 : i32
    %c0_i32_1 = arith.constant 0 : i32
    return %c0_i32, %c0_i32_0 : i32, i32
  }
  func.func @transform_9(%arg0: i32, %arg1: i32) -> (i32, i32) {
    %c0_i32 = arith.constant 0 : i32
    %c0_i32_0 = arith.constant 0 : i32
    %c0_i32_1 = arith.constant 0 : i32
    return %c0_i32, %c0_i32_0 : i32, i32
  }
  func.func @transform_10(%arg0: i32, %arg1: i32) -> (i32, i32) {
    %c0_i32 = arith.constant 0 : i32
    %c0_i32_0 = arith.constant 0 : i32
    %c0_i32_1 = arith.constant 0 : i32
    return %c0_i32, %c0_i32_0 : i32, i32
  }
  func.func @transform_11(%arg0: i32, %arg1: i32) -> (i32, i32) {
    %c0_i32 = arith.constant 0 : i32
    %c0_i32_0 = arith.constant 0 : i32
    %c0_i32_1 = arith.constant 0 : i32
    return %c0_i32, %c0_i32_0 : i32, i32
  }
  func.func @transform_12(%arg0: i32, %arg1: i32) -> (i32, i32) {
    %c0_i32 = arith.constant 0 : i32
    %c0_i32_0 = arith.constant 0 : i32
    %c0_i32_1 = arith.constant 0 : i32
    return %c0_i32, %c0_i32_0 : i32, i32
  }
  func.func @transform_13(%arg0: i32, %arg1: i32) -> (i32, i32) {
    %c0_i32 = arith.constant 0 : i32
    %c0_i32_0 = arith.constant 0 : i32
    %c0_i32_1 = arith.constant 0 : i32
    return %c0_i32, %c0_i32_0 : i32, i32
  }
  func.func @transform_14(%arg0: i32, %arg1: i32) -> (i32, i32) {
    %c0_i32 = arith.constant 0 : i32
    %c0_i32_0 = arith.constant 0 : i32
    %c0_i32_1 = arith.constant 0 : i32
    return %c0_i32, %c0_i32_0 : i32, i32
  }
  func.func @transform_15(%arg0: i32, %arg1: i32) -> (i32, i32) {
    %c0_i32 = arith.constant 0 : i32
    %c0_i32_0 = arith.constant 0 : i32
    return %arg0, %c0_i32 : i32, i32
  }
}

</mosaic_0001>

<llo_original>
// kernel: tpu_custom_call.1
$region0: #{tpu_custom_call.1}
  #allocation0 [shape = 'u32[]', space=smem, size = 0x4, offset = 0x4, fixed_abs, tag = 'smem constant byte address 0x4 - core index']
  #allocation1 [shape = 'u32[144,128]{1,0:T(1,128)}', space=vmem, size = 0x12000, scoped, tag = 'internal scratch']
  #allocation2 [shape = 'f32[8,128]{1,0:T(8,128)}', space=vmem, size = 0x1000, scoped, tag = 'scratch operand']
  %s0 = inlined_call_operand.hbm [shape: f32[8,384], index: 0, kind: input, shape index: {}]
  %s1 = inlined_call_operand.hbm [shape: f32[8,128], index: 1, kind: input, shape index: {}]
  %s2 = inlined_call_operand.hbm [shape: f32[384,128], index: 2, kind: input, shape index: {}]
  %s3 = inlined_call_operand.vmem [shape: f32[1,128], index: 3, kind: input, shape index: {}]
  %s4 = inlined_call_operand.vmem [shape: f32[1,128], index: 4, kind: input, shape index: {}]
  %s5 = inlined_call_operand.vmem [shape: f32[1,128], index: 5, kind: input, shape index: {}]
  %s6 = inlined_call_operand.hbm [shape: f32[128,256], index: 6, kind: input, shape index: {}]
  %s7 = inlined_call_operand.hbm [shape: f32[128,256], index: 7, kind: input, shape index: {}]
  %s8 = inlined_call_operand.vmem [shape: f32[1,256], index: 8, kind: input, shape index: {}]
  %s9 = inlined_call_operand.hbm [shape: f32[128,128], index: 9, kind: input, shape index: {}]
  %s10 = inlined_call_operand.vmem [shape: f32[1,128], index: 10, kind: input, shape index: {}]
  %s11 = inlined_call_operand.hbm [shape: f32[128,128], index: 11, kind: input, shape index: {}]
  %s12 = inlined_call_operand.vmem [shape: f32[1,128], index: 12, kind: input, shape index: {}]
  %s13 = inlined_call_operand.vmem [shape: f32[2,128], index: 13, kind: input, shape index: {}]
  %s14 = inlined_call_operand.vmem [shape: f32[1,2], index: 14, kind: input, shape index: {}]
  %s15 = inlined_call_operand.hbm [shape: f32[8,128], index: 15, kind: output, shape index: {}]
  %s16 = sld [smem:[#allocation0]]
  $region133: #{tpu_custom_call.1} parent=0
    _
  %s18 = ssub.s32 1, %s16
  %s19 = scalar_select 0, %s18, %s16
  $region1: #{tpu_custom_call.1} parent=0
    #allocation3 [shape = 'u8[8192]{0}', space=vmem, size = 0x2000, scoped, tag = 'input window, operand 0']
    #allocation4 [shape = 's32[2]{0}', space=sflag, size = 0x8, scoped, tag = 'scoped memory for tpu_custom_call.1']
    #allocation5 [shape = 's32[2]{0}', space=sflag, size = 0x8, scoped, tag = 'scoped memory for tpu_custom_call.1']
    #allocation6 [shape = 's32[2]{0}', space=sflag, size = 0x8, scoped, tag = 'scoped memory for tpu_custom_call.1']
    #allocation7 [shape = 'u8[4096]{0}', space=vmem, size = 0x1000, scoped, tag = 'input window, operand 1, single buffered']
    #allocation8 [shape = 's32[1]{0}', space=sflag, size = 0x4, scoped, tag = 'scoped memory for tpu_custom_call.1']
    #allocation9 [shape = 'u8[196608]{0}', space=vmem, size = 0x30000, scoped, tag = 'input window, operand 2, single buffered']
    #allocation10 [shape = 'u8[131072]{0}', space=vmem, size = 0x20000, scoped, tag = 'input window, operand 6, single buffered']
    #allocation11 [shape = 's32[1]{0}', space=sflag, size = 0x4, scoped, tag = 'scoped memory for tpu_custom_call.1']
    #allocation12 [shape = 'u8[131072]{0}', space=vmem, size = 0x20000, scoped, tag = 'input window, operand 7, single buffered']
    #allocation13 [shape = 'u8[65536]{0}', space=vmem, size = 0x10000, scoped, tag = 'input window, operand 9, single buffered']
    #allocation14 [shape = 's32[1]{0}', space=sflag, size = 0x4, scoped, tag = 'scoped memory for tpu_custom_call.1']
    #allocation15 [shape = 'u8[65536]{0}', space=vmem, size = 0x10000, scoped, tag = 'input window, operand 11, single buffered']
    #allocation16 [shape = 'u8[512]{0}', space=smem, size = 0x200, scoped, tag = 'input window, operand 14, single buffered']
    #allocation17 [shape = 'u8[4096]{0}', space=vmem, size = 0x1000, scoped, tag = 'output window, operand 0, single buffered']
    %20 = vsyncpa [#allocation4], 0
    %s21 = scalar_lea.sflag [#allocation4], 1
    %22 = vsyncpa %s21, 0
    %23 = vsyncpa [#allocation8], 0
    %24 = vsyncpa [#allocation11], 0
    %25 = vsyncpa [#allocation14], 0
    %26 = vsyncpa [#allocation6], 0
    %27 = vsyncpa [#allocation5], 0
    loop: start=0, step=1, limit=5
    $region2: #{tpu_custom_call.1} parent=1 // loop_pre_header
      _
    $region3: #{tpu_custom_call.1} parent=1 // loop_header
      %s29 = sphi 0, %s33
      %p30 = scmp.ge.s32.totalorder %s29, 5
      %s36 = sphi 0, %s48
      %s37 = sphi 0, %s44
      %s38 = sphi 0, %s36
      %s39 = sphi 0, %s37
      %s40 = sphi 0, %s38
      %s41 = sphi 0, %s39
      %s53 = sphi 0, %s55
      %s56 = sphi 0, %s53
      %s57 = sphi 0, %s56
      %s73 = sphi 0, %s57
      %s79 = sphi 0, %s81
      %s82 = sphi 0, %s79
      %s83 = sphi 0, %s82
      %s99 = sphi 0, %s83
      %s103 = sphi 0, %s103
      %s105 = sphi 0, %s103
      %s106 = sphi 0, %s105
      %s120 = sphi 0, %s106
      %s124 = sphi 0, %s124
      %s126 = sphi 0, %s124
      %s127 = sphi 0, %s126
      %s141 = sphi 0, %s127
      %s145 = sphi 0, %s145
      %s147 = sphi 0, %s145
      %s148 = sphi 0, %s147
      %s162 = sphi 0, %s148
      %s166 = sphi 0, %s166
      %s168 = sphi 0, %s166
      %s169 = sphi 0, %s168
      %s183 = sphi 0, %s169
      %s187 = sphi 0, %s187
      %s189 = sphi 0, %s187
      %s190 = sphi 0, %s189
      %s204 = sphi 0, %s190
      %s208 = sphi 0, %s208
      %s210 = sphi 0, %s208
      %s211 = sphi 0, %s210
      %s225 = sphi 0, %s211
      %s229 = sphi 0, %s229
      %s231 = sphi 0, %s229
      %s232 = sphi 0, %s231
      %s246 = sphi 0, %s232
      %s250 = sphi 0, %s250
      %s252 = sphi 0, %s250
      %s253 = sphi 0, %s252
      %s267 = sphi 0, %s253
      %s271 = sphi 0, %s271
      %s273 = sphi 0, %s271
      %s274 = sphi 0, %s273
      %s288 = sphi 0, %s274
      %s292 = sphi 0, %s292
      %s294 = sphi 0, %s292
      %s295 = sphi 0, %s294
      %s309 = sphi 0, %s295
      %s313 = sphi 0, %s313
      %s315 = sphi 0, %s313
      %s316 = sphi 0, %s315
      %s330 = sphi 0, %s316
      %s334 = sphi 0, %s334
      %s336 = sphi 0, %s334
      %s337 = sphi 0, %s336
      %s351 = sphi 0, %s337
      %s355 = sphi 0, %s355
      %s357 = sphi 0, %s355
      %s358 = sphi 0, %s357
      %s372 = sphi 0, %s358
      %s378 = sphi 0, %s380
      %s381 = sphi 0, %s378
      %s382 = sphi 0, %s381
      %s398 = sphi 0, %s382
    $region4: #{tpu_custom_call.1} parent=1 // loop_header_branch
      %32 = sbr.rel (%p30) target = $region8
    $region5: #{tpu_custom_call.1} parent=1 // loop_body
      %s34 = ssub.s32 %s29, 1
      %s35 = ssub.s32 %s29, 2
      %s42 = sadd.s32 1, %s37
      %p43 = scmp.ge.s32.totalorder %s42, 3
      %s44 = scalar_select %p43, 0, %s42
      %s45 = sadd.s32 1, %s36
      %s46 = scalar_select %p43, %s45, %s36
      %p47 = scmp.ge.s32.totalorder %s46, 1
      %s48 = scalar_select %p47, 0, %s46
      %s49 = ssub.s32 %s36, %s48
      %s50 = ssub.s32 %s37, %s44
      %s51 = sor.u32 %s49, %s50
      %p52 = scmp.eq.s32.totalorder %s51, 0
      %s54 = sadd.s32 %s53, 1
      %s55 = scalar_select %p52, %s53, %s54
      %p58 = pneg %p52
      %p59 = scmp.eq.s32.totalorder %s29, 2
      %p60 = por %p58, %p59
      %p61 = scmp.ne.s32.totalorder %s53, %s56
      %p62 = scmp.eq.s32.totalorder %s29, 0
      %p63 = por %p61, %p62
      %p64 = scmp.ne.s32.totalorder %s53, %s56
      %p65 = scmp.eq.s32.totalorder %s34, 2
      %p66 = por %p64, %p65
      %p67 = scmp.ne.s32.totalorder %s56, %s57
      %p68 = scmp.eq.s32.totalorder %s34, 0
      %p69 = por %p67, %p68
      %p70 = scmp.ne.s32.totalorder %s56, %s57
      %p71 = scmp.eq.s32.totalorder %s35, 2
      %p72 = por %p70, %p71
      %p74 = scmp.ne.s32.totalorder %s57, %s73
      %p75 = scmp.eq.s32.totalorder %s35, 0
      %p76 = por %p74, %p75
      %s77 = ssub.s32 %s36, %s48
      %p78 = scmp.eq.s32.totalorder %s77, 0
      %s80 = sadd.s32 %s79, 1
      %s81 = scalar_select %p78, %s79, %s80
      %p84 = pneg %p78
      %p85 = scmp.eq.s32.totalorder %s29, 2
      %p86 = por %p84, %p85
      %p87 = scmp.ne.s32.totalorder %s79, %s82
      %p88 = scmp.eq.s32.totalorder %s29, 0
      %p89 = por %p87, %p88
      %p90 = scmp.ne.s32.totalorder %s79, %s82
      %p91 = scmp.eq.s32.totalorder %s34, 2
      %p92 = por %p90, %p91
      %p93 = scmp.ne.s32.totalorder %s82, %s83
      %p94 = scmp.eq.s32.totalorder %s34, 0
      %p95 = por %p93, %p94
      %p96 = scmp.ne.s32.totalorder %s82, %s83
      %p97 = scmp.eq.s32.totalorder %s35, 2
      %p98 = por %p96, %p97
      %p100 = scmp.ne.s32.totalorder %s83, %s99
      %p101 = scmp.eq.s32.totalorder %s35, 0
      %p102 = por %p100, %p101
      %s104 = sadd.s32 %s103, 1
      %p107 = scmp.eq.s32.totalorder %s29, 2
      %p108 = scmp.ne.s32.totalorder %s103, %s105
      %p109 = scmp.eq.s32.totalorder %s29, 0
      %p110 = por %p108, %p109
      %p111 = scmp.ne.s32.totalorder %s103, %s105
      %p112 = scmp.eq.s32.totalorder %s34, 2
      %p113 = por %p111, %p112
      %p114 = scmp.ne.s32.totalorder %s105, %s106
      %p115 = scmp.eq.s32.totalorder %s34, 0
      %p116 = por %p114, %p115
      %p117 = scmp.ne.s32.totalorder %s105, %s106
      %p118 = scmp.eq.s32.totalorder %s35, 2
      %p119 = por %p117, %p118
      %p121 = scmp.ne.s32.totalorder %s106, %s120
      %p122 = scmp.eq.s32.totalorder %s35, 0
      %p123 = por %p121, %p122
      %s125 = sadd.s32 %s124, 1
      %p128 = scmp.eq.s32.totalorder %s29, 2
      %p129 = scmp.ne.s32.totalorder %s124, %s126
      %p130 = scmp.eq.s32.totalorder %s29, 0
      %p131 = por %p129, %p130
      %p132 = scmp.ne.s32.totalorder %s124, %s126
      %p133 = scmp.eq.s32.totalorder %s34, 2
      %p134 = por %p132, %p133
      %p135 = scmp.ne.s32.totalorder %s126, %s127
      %p136 = scmp.eq.s32.totalorder %s34, 0
      %p137 = por %p135, %p136
      %p138 = scmp.ne.s32.totalorder %s126, %s127
      %p139 = scmp.eq.s32.totalorder %s35, 2
      %p140 = por %p138, %p139
      %p142 = scmp.ne.s32.totalorder %s127, %s141
      %p143 = scmp.eq.s32.totalorder %s35, 0
      %p144 = por %p142, %p143
      %s146 = sadd.s32 %s145, 1
      %p149 = scmp.eq.s32.totalorder %s29, 2
      %p150 = scmp.ne.s32.totalorder %s145, %s147
      %p151 = scmp.eq.s32.totalorder %s29, 0
      %p152 = por %p150, %p151
      %p153 = scmp.ne.s32.totalorder %s145, %s147
      %p154 = scmp.eq.s32.totalorder %s34, 2
      %p155 = por %p153, %p154
      %p156 = scmp.ne.s32.totalorder %s147, %s148
      %p157 = scmp.eq.s32.totalorder %s34, 0
      %p158 = por %p156, %p157
      %p159 = scmp.ne.s32.totalorder %s147, %s148
      %p160 = scmp.eq.s32.totalorder %s35, 2
      %p161 = por %p159, %p160
      %p163 = scmp.ne.s32.totalorder %s148, %s162
      %p164 = scmp.eq.s32.totalorder %s35, 0
      %p165 = por %p163, %p164
      %s167 = sadd.s32 %s166, 1
      %p170 = scmp.eq.s32.totalorder %s29, 2
      %p171 = scmp.ne.s32.totalorder %s166, %s168
      %p172 = scmp.eq.s32.totalorder %s29, 0
      %p173 = por %p171, %p172
      %p174 = scmp.ne.s32.totalorder %s166, %s168
      %p175 = scmp.eq.s32.totalorder %s34, 2
      %p176 = por %p174, %p175
      %p177 = scmp.ne.s32.totalorder %s168, %s169
      %p178 = scmp.eq.s32.totalorder %s34, 0
      %p179 = por %p177, %p178
      %p180 = scmp.ne.s32.totalorder %s168, %s169
      %p181 = scmp.eq.s32.totalorder %s35, 2
      %p182 = por %p180, %p181
      %p184 = scmp.ne.s32.totalorder %s169, %s183
      %p185 = scmp.eq.s32.totalorder %s35, 0
      %p186 = por %p184, %p185
      %s188 = sadd.s32 %s187, 1
      %p191 = scmp.eq.s32.totalorder %s29, 2
      %p192 = scmp.ne.s32.totalorder %s187, %s189
      %p193 = scmp.eq.s32.totalorder %s29, 0
      %p194 = por %p192, %p193
      %p195 = scmp.ne.s32.totalorder %s187, %s189
      %p196 = scmp.eq.s32.totalorder %s34, 2
      %p197 = por %p195, %p196
      %p198 = scmp.ne.s32.totalorder %s189, %s190
      %p199 = scmp.eq.s32.totalorder %s34, 0
      %p200 = por %p198, %p199
      %p201 = scmp.ne.s32.totalorder %s189, %s190
      %p202 = scmp.eq.s32.totalorder %s35, 2
      %p203 = por %p201, %p202
      %p205 = scmp.ne.s32.totalorder %s190, %s204
      %p206 = scmp.eq.s32.totalorder %s35, 0
      %p207 = por %p205, %p206
      %s209 = sadd.s32 %s208, 1
      %p212 = scmp.eq.s32.totalorder %s29, 2
      %p213 = scmp.ne.s32.totalorder %s208, %s210
      %p214 = scmp.eq.s32.totalorder %s29, 0
      %p215 = por %p213, %p214
      %p216 = scmp.ne.s32.totalorder %s208, %s210
      %p217 = scmp.eq.s32.totalorder %s34, 2
      %p218 = por %p216, %p217
      %p219 = scmp.ne.s32.totalorder %s210, %s211
      %p220 = scmp.eq.s32.totalorder %s34, 0
      %p221 = por %p219, %p220
      %p222 = scmp.ne.s32.totalorder %s210, %s211
      %p223 = scmp.eq.s32.totalorder %s35, 2
      %p224 = por %p222, %p223
      %p226 = scmp.ne.s32.totalorder %s211, %s225
      %p227 = scmp.eq.s32.totalorder %s35, 0
      %p228 = por %p226, %p227
      %s230 = sadd.s32 %s229, 1
      %p233 = scmp.eq.s32.totalorder %s29, 2
      %p234 = scmp.ne.s32.totalorder %s229, %s231
      %p235 = scmp.eq.s32.totalorder %s29, 0
      %p236 = por %p234, %p235
      %p237 = scmp.ne.s32.totalorder %s229, %s231
      %p238 = scmp.eq.s32.totalorder %s34, 2
      %p239 = por %p237, %p238
      %p240 = scmp.ne.s32.totalorder %s231, %s232
      %p241 = scmp.eq.s32.totalorder %s34, 0
      %p242 = por %p240, %p241
      %p243 = scmp.ne.s32.totalorder %s231, %s232
      %p244 = scmp.eq.s32.totalorder %s35, 2
      %p245 = por %p243, %p244
      %p247 = scmp.ne.s32.totalorder %s232, %s246
      %p248 = scmp.eq.s32.totalorder %s35, 0
      %p249 = por %p247, %p248
      %s251 = sadd.s32 %s250, 1
      %p254 = scmp.eq.s32.totalorder %s29, 2
      %p255 = scmp.ne.s32.totalorder %s250, %s252
      %p256 = scmp.eq.s32.totalorder %s29, 0
      %p257 = por %p255, %p256
      %p258 = scmp.ne.s32.totalorder %s250, %s252
      %p259 = scmp.eq.s32.totalorder %s34, 2
      %p260 = por %p258, %p259
      %p261 = scmp.ne.s32.totalorder %s252, %s253
      %p262 = scmp.eq.s32.totalorder %s34, 0
      %p263 = por %p261, %p262
      %p264 = scmp.ne.s32.totalorder %s252, %s253
      %p265 = scmp.eq.s32.totalorder %s35, 2
      %p266 = por %p264, %p265
      %p268 = scmp.ne.s32.totalorder %s253, %s267
      %p269 = scmp.eq.s32.totalorder %s35, 0
      %p270 = por %p268, %p269
      %s272 = sadd.s32 %s271, 1
      %p275 = scmp.eq.s32.totalorder %s29, 2
      %p276 = scmp.ne.s32.totalorder %s271, %s273
      %p277 = scmp.eq.s32.totalorder %s29, 0
      %p278 = por %p276, %p277
      %p279 = scmp.ne.s32.totalorder %s271, %s273
      %p280 = scmp.eq.s32.totalorder %s34, 2
      %p281 = por %p279, %p280
      %p282 = scmp.ne.s32.totalorder %s273, %s274
      %p283 = scmp.eq.s32.totalorder %s34, 0
      %p284 = por %p282, %p283
      %p285 = scmp.ne.s32.totalorder %s273, %s274
      %p286 = scmp.eq.s32.totalorder %s35, 2
      %p287 = por %p285, %p286
      %p289 = scmp.ne.s32.totalorder %s274, %s288
      %p290 = scmp.eq.s32.totalorder %s35, 0
      %p291 = por %p289, %p290
      %s293 = sadd.s32 %s292, 1
      %p296 = scmp.eq.s32.totalorder %s29, 2
      %p297 = scmp.ne.s32.totalorder %s292, %s294
      %p298 = scmp.eq.s32.totalorder %s29, 0
      %p299 = por %p297, %p298
      %p300 = scmp.ne.s32.totalorder %s292, %s294
      %p301 = scmp.eq.s32.totalorder %s34, 2
      %p302 = por %p300, %p301
      %p303 = scmp.ne.s32.totalorder %s294, %s295
      %p304 = scmp.eq.s32.totalorder %s34, 0
      %p305 = por %p303, %p304
      %p306 = scmp.ne.s32.totalorder %s294, %s295
      %p307 = scmp.eq.s32.totalorder %s35, 2
      %p308 = por %p306, %p307
      %p310 = scmp.ne.s32.totalorder %s295, %s309
      %p311 = scmp.eq.s32.totalorder %s35, 0
      %p312 = por %p310, %p311
      %s314 = sadd.s32 %s313, 1
      %p317 = scmp.eq.s32.totalorder %s29, 2
      %p318 = scmp.ne.s32.totalorder %s313, %s315
      %p319 = scmp.eq.s32.totalorder %s29, 0
      %p320 = por %p318, %p319
      %p321 = scmp.ne.s32.totalorder %s313, %s315
      %p322 = scmp.eq.s32.totalorder %s34, 2
      %p323 = por %p321, %p322
      %p324 = scmp.ne.s32.totalorder %s315, %s316
      %p325 = scmp.eq.s32.totalorder %s34, 0
      %p326 = por %p324, %p325
      %p327 = scmp.ne.s32.totalorder %s315, %s316
      %p328 = scmp.eq.s32.totalorder %s35, 2
      %p329 = por %p327, %p328
      %p331 = scmp.ne.s32.totalorder %s316, %s330
      %p332 = scmp.eq.s32.totalorder %s35, 0
      %p333 = por %p331, %p332
      %s335 = sadd.s32 %s334, 1
      %p338 = scmp.eq.s32.totalorder %s29, 2
      %p339 = scmp.ne.s32.totalorder %s334, %s336
      %p340 = scmp.eq.s32.totalorder %s29, 0
      %p341 = por %p339, %p340
      %p342 = scmp.ne.s32.totalorder %s334, %s336
      %p343 = scmp.eq.s32.totalorder %s34, 2
      %p344 = por %p342, %p343
      %p345 = scmp.ne.s32.totalorder %s336, %s337
      %p346 = scmp.eq.s32.totalorder %s34, 0
      %p347 = por %p345, %p346
      %p348 = scmp.ne.s32.totalorder %s336, %s337
      %p349 = scmp.eq.s32.totalorder %s35, 2
      %p350 = por %p348, %p349
      %p352 = scmp.ne.s32.totalorder %s337, %s351
      %p353 = scmp.eq.s32.totalorder %s35, 0
      %p354 = por %p352, %p353
      %s356 = sadd.s32 %s355, 1
      %p359 = scmp.eq.s32.totalorder %s29, 2
      %p360 = scmp.ne.s32.totalorder %s355, %s357
      %p361 = scmp.eq.s32.totalorder %s29, 0
      %p362 = por %p360, %p361
      %p363 = scmp.ne.s32.totalorder %s355, %s357
      %p364 = scmp.eq.s32.totalorder %s34, 2
      %p365 = por %p363, %p364
      %p366 = scmp.ne.s32.totalorder %s357, %s358
      %p367 = scmp.eq.s32.totalorder %s34, 0
      %p368 = por %p366, %p367
      %p369 = scmp.ne.s32.totalorder %s357, %s358
      %p370 = scmp.eq.s32.totalorder %s35, 2
      %p371 = por %p369, %p370
      %p373 = scmp.ne.s32.totalorder %s358, %s372
      %p374 = scmp.eq.s32.totalorder %s35, 0
      %p375 = por %p373, %p374
      %s376 = ssub.s32 %s36, %s48
      %p377 = scmp.eq.s32.totalorder %s376, 0
      %s379 = sadd.s32 %s378, 1
      %s380 = scalar_select %p377, %s378, %s379
      %p383 = pneg %p377
      %p384 = scmp.eq.s32.totalorder %s29, 2
      %p385 = por %p383, %p384
      %p386 = scmp.ne.s32.totalorder %s378, %s381
      %p387 = scmp.eq.s32.totalorder %s29, 0
      %p388 = por %p386, %p387
      %p389 = scmp.ne.s32.totalorder %s378, %s381
      %p390 = scmp.eq.s32.totalorder %s34, 2
      %p391 = por %p389, %p390
      %p392 = scmp.ne.s32.totalorder %s381, %s382
      %p393 = scmp.eq.s32.totalorder %s34, 0
      %p394 = por %p392, %p393
      %p395 = scmp.ne.s32.totalorder %s381, %s382
      %p396 = scmp.eq.s32.totalorder %s35, 2
      %p397 = por %p395, %p396
      %p399 = scmp.ne.s32.totalorder %s382, %s398
      %p400 = scmp.eq.s32.totalorder %s35, 0
      %p401 = por %p399, %p400
      %p402 = scmp.le.s32.totalorder 1, %s29
      %p403 = scmp.lt.s32.totalorder %s29, 4
      %p404 = pnand %p402, %p403
      %p405 = pneg %p404
      // Predicated region
      $region9: #{tpu_custom_call.1} parent=5 // pred_check
        _
      $region10: #{tpu_custom_call.1} parent=5 // pred_check_branch
        %407 = sbr.rel (%p404) target = $region12
      $region11: #{tpu_custom_call.1} parent=5 // pred_region
        %s408 = ssub.s32 %s29, 1
        // Predicated region
        $region13: #{tpu_custom_call.1} parent=11 // pred_check
          %p409 = pneg %p95
        $region14: #{tpu_custom_call.1} parent=11 // pred_check_branch
          %411 = sbr.rel (%p409) target = $region16
        $region15: #{tpu_custom_call.1} parent=11 // pred_region
          %s413 = ssub.s32 128, 128
          %414 = vsyncadd [#allocation8], %s413
          %s415 = smul.addr %s38, 128
          %s416 = scalar_lea.hbm %s1, %s415
          %s418 = sshll.u32 [#allocation7], 4
          %s419 = int_to_ptr.vmem [resolvable:$true] %s418
          %421 = dma.hbm_to_vmem [thread:$0]  %s416, 128, %s419, [#allocation8]
        $region16: #{tpu_custom_call.1} parent=11 // pred_fallthru
          _
        // Predicated region
        $region17: #{tpu_custom_call.1} parent=11 // pred_check
          %p422 = pneg %p116
        $region18: #{tpu_custom_call.1} parent=11 // pred_check_branch
          %424 = sbr.rel (%p422) target = $region20
        $region19: #{tpu_custom_call.1} parent=11 // pred_region
          %s426 = ssub.s32 6144, 6144
          %427 = vsyncadd [#allocation8], %s426
          %s428 = sshll.u32 [#allocation9], 4
          %s429 = int_to_ptr.vmem [resolvable:$true] %s428
          %434 = dma.hbm_to_vmem [thread:$0]  %s2, 6144, %s429, [#allocation8], 128, 128, 8
        $region20: #{tpu_custom_call.1} parent=11 // pred_fallthru
          _
        // Predicated region
        $region21: #{tpu_custom_call.1} parent=11 // pred_check
          %p435 = pneg %p137
        $region22: #{tpu_custom_call.1} parent=11 // pred_check_branch
          %437 = sbr.rel (%p435) target = $region24
        $region23: #{tpu_custom_call.1} parent=11 // pred_region
          _
        $region24: #{tpu_custom_call.1} parent=11 // pred_fallthru
          _
        // Predicated region
        $region25: #{tpu_custom_call.1} parent=11 // pred_check
          %p438 = pneg %p158
        $region26: #{tpu_custom_call.1} parent=11 // pred_check_branch
          %440 = sbr.rel (%p438) target = $region28
        $region27: #{tpu_custom_call.1} parent=11 // pred_region
          _
        $region28: #{tpu_custom_call.1} parent=11 // pred_fallthru
          _
        // Predicated region
        $region29: #{tpu_custom_call.1} parent=11 // pred_check
          %p441 = pneg %p179
        $region30: #{tpu_custom_call.1} parent=11 // pred_check_branch
          %443 = sbr.rel (%p441) target = $region32
        $region31: #{tpu_custom_call.1} parent=11 // pred_region
          _
        $region32: #{tpu_custom_call.1} parent=11 // pred_fallthru
          _
        // Predicated region
        $region33: #{tpu_custom_call.1} parent=11 // pred_check
          %p444 = pneg %p200
        $region34: #{tpu_custom_call.1} parent=11 // pred_check_branch
          %446 = sbr.rel (%p444) target = $region36
        $region35: #{tpu_custom_call.1} parent=11 // pred_region
          %s448 = ssub.s32 4096, 4096
          %449 = vsyncadd [#allocation11], %s448
          %s450 = sshll.u32 [#allocation10], 4
          %s451 = int_to_ptr.vmem [resolvable:$true] %s450
          %456 = dma.hbm_to_vmem [thread:$0]  %s6, 4096, %s451, [#allocation11], 256, 256, 16
        $region36: #{tpu_custom_call.1} parent=11 // pred_fallthru
          _
        // Predicated region
        $region37: #{tpu_custom_call.1} parent=11 // pred_check
          %p457 = pneg %p221
        $region38: #{tpu_custom_call.1} parent=11 // pred_check_branch
          %459 = sbr.rel (%p457) target = $region40
        $region39: #{tpu_custom_call.1} parent=11 // pred_region
          %s461 = ssub.s32 4096, 4096
          %462 = vsyncadd [#allocation11], %s461
          %s463 = sshll.u32 [#allocation12], 4
          %s464 = int_to_ptr.vmem [resolvable:$true] %s463
          %469 = dma.hbm_to_vmem [thread:$0]  %s7, 4096, %s464, [#allocation11], 256, 256, 16
        $region40: #{tpu_custom_call.1} parent=11 // pred_fallthru
          _
        // Predicated region
        $region41: #{tpu_custom_call.1} parent=11 // pred_check
          %p470 = pneg %p242
        $region42: #{tpu_custom_call.1} parent=11 // pred_check_branch
          %472 = sbr.rel (%p470) target = $region44
        $region43: #{tpu_custom_call.1} parent=11 // pred_region
          _
        $region44: #{tpu_custom_call.1} parent=11 // pred_fallthru
          _
        // Predicated region
        $region45: #{tpu_custom_call.1} parent=11 // pred_check
          %p473 = pneg %p263
        $region46: #{tpu_custom_call.1} parent=11 // pred_check_branch
          %475 = sbr.rel (%p473) target = $region48
        $region47: #{tpu_custom_call.1} parent=11 // pred_region
          %s477 = ssub.s32 2048, 2048
          %478 = vsyncadd [#allocation14], %s477
          %s479 = sshll.u32 [#allocation13], 4
          %s480 = int_to_ptr.vmem [resolvable:$true] %s479
          %485 = dma.hbm_to_vmem [thread:$0]  %s9, 2048, %s480, [#allocation14], 128, 128, 8
        $region48: #{tpu_custom_call.1} parent=11 // pred_fallthru
          _
        // Predicated region
        $region49: #{tpu_custom_call.1} parent=11 // pred_check
          %p486 = pneg %p284
        $region50: #{tpu_custom_call.1} parent=11 // pred_check_branch
          %488 = sbr.rel (%p486) target = $region52
        $region51: #{tpu_custom_call.1} parent=11 // pred_region
          _
        $region52: #{tpu_custom_call.1} parent=11 // pred_fallthru
          _
        // Predicated region
        $region53: #{tpu_custom_call.1} parent=11 // pred_check
          %p489 = pneg %p305
        $region54: #{tpu_custom_call.1} parent=11 // pred_check_branch
          %491 = sbr.rel (%p489) target = $region56
        $region55: #{tpu_custom_call.1} parent=11 // pred_region
          %s493 = ssub.s32 2048, 2048
          %494 = vsyncadd [#allocation14], %s493
          %s495 = sshll.u32 [#allocation15], 4
          %s496 = int_to_ptr.vmem [resolvable:$true] %s495
          %501 = dma.hbm_to_vmem [thread:$0]  %s11, 2048, %s496, [#allocation14], 128, 128, 8
        $region56: #{tpu_custom_call.1} parent=11 // pred_fallthru
          _
        // Predicated region
        $region57: #{tpu_custom_call.1} parent=11 // pred_check
          %p502 = pneg %p326
        $region58: #{tpu_custom_call.1} parent=11 // pred_check_branch
          %504 = sbr.rel (%p502) target = $region60
        $region59: #{tpu_custom_call.1} parent=11 // pred_region
          _
        $region60: #{tpu_custom_call.1} parent=11 // pred_fallthru
          _
        // Predicated region
        $region61: #{tpu_custom_call.1} parent=11 // pred_check
          %p505 = pneg %p347
        $region62: #{tpu_custom_call.1} parent=11 // pred_check_branch
          %507 = sbr.rel (%p505) target = $region64
        $region63: #{tpu_custom_call.1} parent=11 // pred_region
          _
        $region64: #{tpu_custom_call.1} parent=11 // pred_fallthru
          _
        // Predicated region
        $region65: #{tpu_custom_call.1} parent=11 // pred_check
          %p508 = pneg %p368
        $region66: #{tpu_custom_call.1} parent=11 // pred_check_branch
          %510 = sbr.rel (%p508) target = $region68
        $region67: #{tpu_custom_call.1} parent=11 // pred_region
          %s512 = ssub.s32 16, 16
          %513 = vsyncadd [#allocation6], %s512
          %s515 = sshll.u32 %s14, 4
          %s516 = int_to_ptr.vmem [resolvable:$true] %s515
          %518 = dma.vmem_to_smem %s516, 16, [#allocation16], [#allocation6]
        $region68: #{tpu_custom_call.1} parent=11 // pred_fallthru
          _
      $region12: #{tpu_custom_call.1} parent=5 // pred_fallthru
        _
      %p519 = scmp.lt.s32.totalorder %s29, 3
      // Predicated region
      $region69: #{tpu_custom_call.1} parent=5 // pred_check
        %p520 = pneg %p519
      $region70: #{tpu_custom_call.1} parent=5 // pred_check_branch
        %522 = sbr.rel (%p520) target = $region72
      $region71: #{tpu_custom_call.1} parent=5 // pred_region
        // Predicated region
        $region73: #{tpu_custom_call.1} parent=71 // pred_check
          %p523 = pneg %p63
        $region74: #{tpu_custom_call.1} parent=71 // pred_check_branch
          %525 = sbr.rel (%p523) target = $region76
        $region75: #{tpu_custom_call.1} parent=71 // pred_region
          %s526 = sand.u32 %s53, 1
          %s527 = scalar_lea.sflag [#allocation4], %s526
          %s528 = sand.u32 %s53, 1
          %s529 = smul.addr %s528, 8
          %s530 = scalar_lea.vmem [#allocation3], %s529
          %s532 = ssub.s32 128, 128
          %533 = vsyncadd %s527, %s532
          %s534 = smul.addr %s36, 3
          %s535 = sadd.s32 %s37, %s534
          %s536 = smul.addr %s535, 128
          %s537 = scalar_lea.hbm %s0, %s536
          %s539 = sshll.u32 %s530, 4
          %s540 = int_to_ptr.vmem [resolvable:$true] %s539
          %542 = dma.hbm_to_vmem [thread:$0]  %s537, 128, %s540, %s527
        $region76: #{tpu_custom_call.1} parent=71 // pred_fallthru
          _
      $region72: #{tpu_custom_call.1} parent=5 // pred_fallthru
        _
      %p543 = scmp.le.s32.totalorder 1, %s29
      %p544 = scmp.lt.s32.totalorder %s29, 4
      %p545 = pnand %p543, %p544
      %p546 = pneg %p545
      // Predicated region
      $region77: #{tpu_custom_call.1} parent=5 // pred_check
        _
      $region78: #{tpu_custom_call.1} parent=5 // pred_check_branch
        %548 = sbr.rel (%p545) target = $region80
      $region79: #{tpu_custom_call.1} parent=5 // pred_region
        %s549 = ssub.s32 %s29, 1
        %s550 = sand.u32 %s56, 1
        %s551 = scalar_lea.sflag [#allocation4], %s550
        %s552 = sand.u32 %s56, 1
        %s553 = smul.addr %s552, 8
        %s554 = scalar_lea.vmem [#allocation3], %s553
        // Predicated region
        $region81: #{tpu_custom_call.1} parent=79 // pred_check
          %p555 = pneg %p69
        $region82: #{tpu_custom_call.1} parent=79 // pred_check_branch
          %557 = sbr.rel (%p555) target = $region84
        $region83: #{tpu_custom_call.1} parent=79 // pred_region
          %558 = dma.done %s551, 128
        $region84: #{tpu_custom_call.1} parent=79 // pred_fallthru
          _
        // Predicated region
        $region85: #{tpu_custom_call.1} parent=79 // pred_check
          %p559 = pneg %p95
        $region86: #{tpu_custom_call.1} parent=79 // pred_check_branch
          %561 = sbr.rel (%p559) target = $region88
        $region87: #{tpu_custom_call.1} parent=79 // pred_region
          %562 = dma.done [#allocation8], 128
        $region88: #{tpu_custom_call.1} parent=79 // pred_fallthru
          _
        // Predicated region
        $region89: #{tpu_custom_call.1} parent=79 // pred_check
          %p563 = pneg %p116
        $region90: #{tpu_custom_call.1} parent=79 // pred_check_branch
          %565 = sbr.rel (%p563) target = $region92
        $region91: #{tpu_custom_call.1} parent=79 // pred_region
          %566 = dma.done [#allocation8], 6144
        $region92: #{tpu_custom_call.1} parent=79 // pred_fallthru
          _
        // Predicated region
        $region93: #{tpu_custom_call.1} parent=79 // pred_check
          %p567 = pneg %p200
        $region94: #{tpu_custom_call.1} parent=79 // pred_check_branch
          %569 = sbr.rel (%p567) target = $region96
        $region95: #{tpu_custom_call.1} parent=79 // pred_region
          %570 = dma.done [#allocation11], 4096
        $region96: #{tpu_custom_call.1} parent=79 // pred_fallthru
          _
        // Predicated region
        $region97: #{tpu_custom_call.1} parent=79 // pred_check
          %p571 = pneg %p221
        $region98: #{tpu_custom_call.1} parent=79 // pred_check_branch
          %573 = sbr.rel (%p571) target = $region100
        $region99: #{tpu_custom_call.1} parent=79 // pred_region
          %574 = dma.done [#allocation11], 4096
        $region100: #{tpu_custom_call.1} parent=79 // pred_fallthru
          _
        // Predicated region
        $region101: #{tpu_custom_call.1} parent=79 // pred_check
          %p575 = pneg %p263
        $region102: #{tpu_custom_call.1} parent=79 // pred_check_branch
          %577 = sbr.rel (%p575) target = $region104
        $region103: #{tpu_custom_call.1} parent=79 // pred_region
          %578 = dma.done [#allocation14], 2048
        $region104: #{tpu_custom_call.1} parent=79 // pred_fallthru
          _
        // Predicated region
        $region105: #{tpu_custom_call.1} parent=79 // pred_check
          %p579 = pneg %p305
        $region106: #{tpu_custom_call.1} parent=79 // pred_check_branch
          %581 = sbr.rel (%p579) target = $region108
        $region107: #{tpu_custom_call.1} parent=79 // pred_region
          %582 = dma.done [#allocation14], 2048
        $region108: #{tpu_custom_call.1} parent=79 // pred_fallthru
          _
        // Predicated region
        $region109: #{tpu_custom_call.1} parent=79 // pred_check
          %p583 = pneg %p368
        $region110: #{tpu_custom_call.1} parent=79 // pred_check_branch
          %585 = sbr.rel (%p583) target = $region112
        $region111: #{tpu_custom_call.1} parent=79 // pred_region
          %586 = dma.done [#allocation6], 16
        $region112: #{tpu_custom_call.1} parent=79 // pred_fallthru
          _
        %587 = sfence
        %s588 = sand.u32 %s56, 1
        %s589 = scalar_lea.sflag [#allocation4], %s588
        %s590 = sand.u32 %s56, 1
        %s591 = smul.addr %s590, 8
        %s592 = scalar_lea.vmem [#allocation3], %s591
        %p593 = pneg %p69
        %p594 = pneg %p66
        %p595 = pneg %p95
        %p596 = pneg %p92
        %p597 = pneg %p116
        %p598 = pneg %p113
        %p599 = pneg %p137
        %p600 = pneg %p134
        %p601 = pneg %p158
        %p602 = pneg %p155
        %p603 = pneg %p179
        %p604 = pneg %p176
        %p605 = pneg %p200
        %p606 = pneg %p197
        %p607 = pneg %p221
        %p608 = pneg %p218
        %p609 = pneg %p242
        %p610 = pneg %p239
        %p611 = pneg %p263
        %p612 = pneg %p260
        %p613 = pneg %p284
        %p614 = pneg %p281
        %p615 = pneg %p305
        %p616 = pneg %p302
        %p617 = pneg %p326
        %p618 = pneg %p323
        %p619 = pneg %p347
        %p620 = pneg %p344
        %p621 = pneg %p368
        %p622 = pneg %p365
        %p623 = pneg %p394
        %p624 = pneg %p391
        %p625 = scmp.eq.s32.totalorder %s39, 0
        // Predicated region
        $region113: #{tpu_custom_call.1} parent=79 // pred_check
          %p626 = pneg %p625
        $region114: #{tpu_custom_call.1} parent=79 // pred_check_branch
          %628 = sbr.rel (%p626) target = $region116
        $region115: #{tpu_custom_call.1} parent=79 // pred_region
          %629 = vst [vmem:[#allocation2] sm:$0xff] 0.0
        $region116: #{tpu_custom_call.1} parent=79 // pred_fallthru
          _
        %s630 = smul.u32 %s39, 128
        %s631 = scalar_lea.vmem [#allocation9], %s630
        %v632 = vld [vmem:[%s631] sm:$0xff]
        %v633 = vld [vmem:[%s631 + $0x8] sm:$0xff]
        %v634 = vld [vmem:[%s631 + $0x10] sm:$0xff]
        %v635 = vld [vmem:[%s631 + $0x18] sm:$0xff]
        %v636 = vld [vmem:[%s631 + $0x20] sm:$0xff]
        %v637 = vld [vmem:[%s631 + $0x28] sm:$0xff]
        %v638 = vld [vmem:[%s631 + $0x30] sm:$0xff]
        %v639 = vld [vmem:[%s631 + $0x38] sm:$0xff]
        %v640 = vld [vmem:[%s631 + $0x40] sm:$0xff]
        %v641 = vld [vmem:[%s631 + $0x48] sm:$0xff]
        %v642 = vld [vmem:[%s631 + $0x50] sm:$0xff]
        %v643 = vld [vmem:[%s631 + $0x58] sm:$0xff]
        %v644 = vld [vmem:[%s631 + $0x60] sm:$0xff]
        %v645 = vld [vmem:[%s631 + $0x68] sm:$0xff]
        %v646 = vld [vmem:[%s631 + $0x70] sm:$0xff]
        %v647 = vld [vmem:[%s631 + $0x78] sm:$0xff]
        %v648 = vld [vmem:[#allocation2] sm:$0xff]
        %v649 = vld [vmem:[%s554] sm:$0xff]
        %650 = vmatprep.subr.mxu0 0.0
        %651 = vmatpush1.msra.mxu0 %v632
        %652 = vmatprep.subr.mxu0 0.0
        %653 = vmatpush1.msra.mxu0 %v633
        %654 = vmatprep.subr.mxu0 0.0
        %655 = vmatpush1.msra.mxu0 %v634
        %656 = vmatprep.subr.mxu0 0.0
        %657 = vmatpush1.msra.mxu0 %v635
        %658 = vmatprep.subr.mxu0 0.0
        %659 = vmatpush1.msra.mxu0 %v636
        %660 = vmatprep.subr.mxu0 0.0
        %661 = vmatpush1.msra.mxu0 %v637
        %662 = vmatprep.subr.mxu0 0.0
        %663 = vmatpush1.msra.mxu0 %v638
        %664 = vmatprep.subr.mxu0 0.0
        %665 = vmatpush1.msra.mxu0 %v639
        %666 = vmatprep.subr.mxu0 0.0
        %667 = vmatpush1.msra.mxu0 %v640
        %668 = vmatprep.subr.mxu0 0.0
        %669 = vmatpush1.msra.mxu0 %v641
        %670 = vmatprep.subr.mxu0 0.0
        %671 = vmatpush1.msra.mxu0 %v642
        %672 = vmatprep.subr.mxu0 0.0
        %673 = vmatpush1.msra.mxu0 %v643
        %674 = vmatprep.subr.mxu0 0.0
        %675 = vmatpush1.msra.mxu0 %v644
        %676 = vmatprep.subr.mxu0 0.0
        %677 = vmatpush1.msra.mxu0 %v645
        %678 = vmatprep.subr.mxu0 0.0
        %679 = vmatpush1.msra.mxu0 %v646
        %680 = vmatprep.subr.mxu0 0.0
        %681 = vmatpush1.msra.mxu0 %v647
        %682 = vmatprep.subr.mxu0 0.0
        %683 = vmatpush1.msra.mxu0 0.0
        %684 = vmatprep.subr.mxu0 0.0
        %685 = vmatpush1.msra.mxu0 0.0
        %686 = vmatprep.subr.mxu0 0.0
        %687 = vmatpush1.msra.mxu0 0.0
        %688 = vmatprep.subr.mxu0 0.0
        %689 = vmatpush1.msra.mxu0 0.0
        %690 = vmatprep.subr.mxu0 0.0
        %691 = vmatpush1.msra.mxu0 0.0
        %692 = vmatprep.subr.mxu0 0.0
        %693 = vmatpush1.msra.mxu0 0.0
        %694 = vmatprep.subr.mxu0 0.0
        %695 = vmatpush1.msra.mxu0 0.0
        %696 = vmatprep.subr.mxu0 0.0
        %697 = vmatpush1.msra.mxu0 0.0
        %698 = vmatprep.subr.mxu0 0.0
        %699 = vmatpush1.msra.mxu0 0.0
        %700 = vmatprep.subr.mxu0 0.0
        %701 = vmatpush1.msra.mxu0 0.0
        %702 = vmatprep.subr.mxu0 0.0
        %703 = vmatpush1.msra.mxu0 0.0
        %704 = vmatprep.subr.mxu0 0.0
        %705 = vmatpush1.msra.mxu0 0.0
        %706 = vmatprep.subr.mxu0 0.0
        %707 = vmatpush1.msra.mxu0 0.0
        %708 = vmatprep.subr.mxu0 0.0
        %709 = vmatpush1.msra.mxu0 0.0
        %710 = vmatprep.subr.mxu0 0.0
        %711 = vmatpush1.msra.mxu0 0.0
        %712 = vmatprep.subr.mxu0 0.0
        %713 = vmatpush1.msra.mxu0 0.0
        %714 = vmatprep.mubr.f32.mxu0 0.0
        %715 = vmatmul.mubr.f32.gmra.mrb[0].mxu0 %v649
        %v716 = vpop.f32.mrb[0].mxu0
        %v717 = vadd.f32 0.0, %v716
        %v718 = vpop.f32.mrb[0].mxu0
        %719 = vdwg.mxu0
        %v720 = vadd.f32 %v648, %v717
        %721 = vst [vmem:[#allocation2] sm:$0xff] %v720
        %p722 = scmp.eq.s32.totalorder %s39, 2
        // Predicated region
        $region117: #{tpu_custom_call.1} parent=79 // pred_check
          %p723 = pneg %p722
        $region118: #{tpu_custom_call.1} parent=79 // pred_check_branch
          %725 = sbr.rel (%p723) target = $region120
        $region119: #{tpu_custom_call.1} parent=79 // pred_region
          %v726 = vld [vmem:[#allocation2] sm:$0xff]
          %v727 = vld [vmem:[%s3] sm:$0x1]
          %v729 = vlaneseq
          %v730 = vshrl.u32 %v729, 7
          %v731 = vsub.s32 0, %v730
          %v732 = vrot.slane %v727, %v731
          %v734 = vadd.f32 %v726, %v732
          %735 = vadd.xlane.f32.xlu0 %v734
          %v736 = vpop.xlane.xlu0 %735
          %v737 = vrcp.pop 50.0
          %v738 = vmul.f32 %v736, %v737
          %v739 = vlaneseq
          %v740 = vand.u32 %v739, 127
          %vm741 = vcmp.lt.s32.totalorder %v740, 50
          %v742 = vsub.f32 %v734, %v738
          %v743 = vsel %vm741, %v742, 0.0
          %v744 = vmul.f32 %v743, %v743
          %745 = vadd.xlane.f32.xlu0 %v744
          %v746 = vpop.xlane.xlu0 %745
          %v747 = vmul.f32 %v746, %v737
          %v748 = vadd.f32 %v747, 1e-05
          %v749 = vrsqrt.pop %v748
          %v750 = vmul.f32 %v743, %v749
          %v751 = vld [vmem:[%s4] sm:$0x1]
          %v753 = vlaneseq
          %v754 = vshrl.u32 %v753, 7
          %v755 = vsub.s32 0, %v754
          %v756 = vrot.slane %v751, %v755
          %v758 = vmul.f32 %v750, %v756
          %v759 = vld [vmem:[%s5] sm:$0x1]
          %v761 = vlaneseq
          %v762 = vshrl.u32 %v761, 7
          %v763 = vsub.s32 0, %v762
          %v764 = vrot.slane %v759, %v763
          %v766 = vadd.f32 %v758, %v764
          %v767 = vtanh.pop %v766
          %v768 = vld [vmem:[#allocation10] sm:$0xff]
          %v769 = vld [vmem:[#allocation10 + $0x8] sm:$0xff]
          %v770 = vld [vmem:[#allocation10 + $0x10] sm:$0xff]
          %v771 = vld [vmem:[#allocation10 + $0x18] sm:$0xff]
          %v772 = vld [vmem:[#allocation10 + $0x20] sm:$0xff]
          %v773 = vld [vmem:[#allocation10 + $0x28] sm:$0xff]
          %v774 = vld [vmem:[#allocation10 + $0x30] sm:$0xff]
          %v775 = vld [vmem:[#allocation10 + $0x38] sm:$0xff]
          %v776 = vld [vmem:[#allocation10 + $0x40] sm:$0xff]
          %v777 = vld [vmem:[#allocation10 + $0x48] sm:$0xff]
          %v778 = vld [vmem:[#allocation10 + $0x50] sm:$0xff]
          %v779 = vld [vmem:[#allocation10 + $0x58] sm:$0xff]
          %v780 = vld [vmem:[#allocation10 + $0x60] sm:$0xff]
          %v781 = vld [vmem:[#allocation10 + $0x68] sm:$0xff]
          %v782 = vld [vmem:[#allocation10 + $0x70] sm:$0xff]
          %v783 = vld [vmem:[#allocation10 + $0x78] sm:$0xff]
          %v784 = vld [vmem:[#allocation10 + $0x80] sm:$0xff]
          %v785 = vld [vmem:[#allocation10 + $0x88] sm:$0xff]
          %v786 = vld [vmem:[#allocation10 + $0x90] sm:$0xff]
          %v787 = vld [vmem:[#allocation10 + $0x98] sm:$0xff]
          %v788 = vld [vmem:[#allocation10 + $0xa0] sm:$0xff]
          %v789 = vld [vmem:[#allocation10 + $0xa8] sm:$0xff]
          %v790 = vld [vmem:[#allocation10 + $0xb0] sm:$0xff]
          %v791 = vld [vmem:[#allocation10 + $0xb8] sm:$0xff]
          %v792 = vld [vmem:[#allocation10 + $0xc0] sm:$0xff]
          %v793 = vld [vmem:[#allocation10 + $0xc8] sm:$0xff]
          %v794 = vld [vmem:[#allocation10 + $0xd0] sm:$0xff]
          %v795 = vld [vmem:[#allocation10 + $0xd8] sm:$0xff]
          %v796 = vld [vmem:[#allocation10 + $0xe0] sm:$0xff]
          %v797 = vld [vmem:[#allocation10 + $0xe8] sm:$0xff]
          %v798 = vld [vmem:[#allocation10 + $0xf0] sm:$0xff]
          %v799 = vld [vmem:[#allocation10 + $0xf8] sm:$0xff]
          %v800 = vld [vmem:[#allocation7] sm:$0xff]
          %v801 = vld [vmem:[#allocation12] sm:$0xff]
          %v802 = vld [vmem:[#allocation12 + $0x8] sm:$0xff]
          %v803 = vld [vmem:[#allocation12 + $0x10] sm:$0xff]
          %v804 = vld [vmem:[#allocation12 + $0x18] sm:$0xff]
          %v805 = vld [vmem:[#allocation12 + $0x20] sm:$0xff]
          %v806 = vld [vmem:[#allocation12 + $0x28] sm:$0xff]
          %v807 = vld [vmem:[#allocation12 + $0x30] sm:$0xff]
          %v808 = vld [vmem:[#allocation12 + $0x38] sm:$0xff]
          %v809 = vld [vmem:[#allocation12 + $0x40] sm:$0xff]
          %v810 = vld [vmem:[#allocation12 + $0x48] sm:$0xff]
          %v811 = vld [vmem:[#allocation12 + $0x50] sm:$0xff]
          %v812 = vld [vmem:[#allocation12 + $0x58] sm:$0xff]
          %v813 = vld [vmem:[#allocation12 + $0x60] sm:$0xff]
          %v814 = vld [vmem:[#allocation12 + $0x68] sm:$0xff]
          %v815 = vld [vmem:[#allocation12 + $0x70] sm:$0xff]
          %v816 = vld [vmem:[#allocation12 + $0x78] sm:$0xff]
          %v817 = vld [vmem:[#allocation12 + $0x80] sm:$0xff]
          %v818 = vld [vmem:[#allocation12 + $0x88] sm:$0xff]
          %v819 = vld [vmem:[#allocation12 + $0x90] sm:$0xff]
          %v820 = vld [vmem:[#allocation12 + $0x98] sm:$0xff]
          %v821 = vld [vmem:[#allocation12 + $0xa0] sm:$0xff]
          %v822 = vld [vmem:[#allocation12 + $0xa8] sm:$0xff]
          %v823 = vld [vmem:[#allocation12 + $0xb0] sm:$0xff]
          %v824 = vld [vmem:[#allocation12 + $0xb8] sm:$0xff]
          %v825 = vld [vmem:[#allocation12 + $0xc0] sm:$0xff]
          %v826 = vld [vmem:[#allocation12 + $0xc8] sm:$0xff]
          %v827 = vld [vmem:[#allocation12 + $0xd0] sm:$0xff]
          %v828 = vld [vmem:[#allocation12 + $0xd8] sm:$0xff]
          %v829 = vld [vmem:[#allocation12 + $0xe0] sm:$0xff]
          %v830 = vld [vmem:[#allocation12 + $0xe8] sm:$0xff]
          %v831 = vld [vmem:[#allocation12 + $0xf0] sm:$0xff]
          %v832 = vld [vmem:[#allocation12 + $0xf8] sm:$0xff]
          %833 = vmatprep.subr.mxu0 %v802
          %834 = vmatpush1.msra.mxu0 %v801
          %835 = vmatprep.subr.mxu0 %v804
          %836 = vmatpush1.msra.mxu0 %v803
          %837 = vmatprep.subr.mxu0 %v806
          %838 = vmatpush1.msra.mxu0 %v805
          %839 = vmatprep.subr.mxu0 %v808
          %840 = vmatpush1.msra.mxu0 %v807
          %841 = vmatprep.subr.mxu0 %v810
          %842 = vmatpush1.msra.mxu0 %v809
          %843 = vmatprep.subr.mxu0 %v812
          %844 = vmatpush1.msra.mxu0 %v811
          %845 = vmatprep.subr.mxu0 %v814
          %846 = vmatpush1.msra.mxu0 %v813
          %847 = vmatprep.subr.mxu0 %v816
          %848 = vmatpush1.msra.mxu0 %v815
          %849 = vmatprep.subr.mxu0 %v818
          %850 = vmatpush1.msra.mxu0 %v817
          %851 = vmatprep.subr.mxu0 %v820
          %852 = vmatpush1.msra.mxu0 %v819
          %853 = vmatprep.subr.mxu0 %v822
          %854 = vmatpush1.msra.mxu0 %v821
          %855 = vmatprep.subr.mxu0 %v824
          %856 = vmatpush1.msra.mxu0 %v823
          %857 = vmatprep.subr.mxu0 %v826
          %858 = vmatpush1.msra.mxu0 %v825
          %859 = vmatprep.subr.mxu0 %v828
          %860 = vmatpush1.msra.mxu0 %v827
          %861 = vmatprep.subr.mxu0 %v830
          %862 = vmatpush1.msra.mxu0 %v829
          %863 = vmatprep.subr.mxu0 %v832
          %864 = vmatpush1.msra.mxu0 %v831
          %865 = vmatprep.subr.mxu0 0.0
          %866 = vmatpush1.msra.mxu0 0.0
          %867 = vmatprep.subr.mxu0 0.0
          %868 = vmatpush1.msra.mxu0 0.0
          %869 = vmatprep.subr.mxu0 0.0
          %870 = vmatpush1.msra.mxu0 0.0
          %871 = vmatprep.subr.mxu0 0.0
          %872 = vmatpush1.msra.mxu0 0.0
          %873 = vmatprep.subr.mxu0 0.0
          %874 = vmatpush1.msra.mxu0 0.0
          %875 = vmatprep.subr.mxu0 0.0
          %876 = vmatpush1.msra.mxu0 0.0
          %877 = vmatprep.subr.mxu0 0.0
          %878 = vmatpush1.msra.mxu0 0.0
          %879 = vmatprep.subr.mxu0 0.0
          %880 = vmatpush1.msra.mxu0 0.0
          %881 = vmatprep.subr.mxu0 0.0
          %882 = vmatpush1.msra.mxu0 0.0
          %883 = vmatprep.subr.mxu0 0.0
          %884 = vmatpush1.msra.mxu0 0.0
          %885 = vmatprep.subr.mxu0 0.0
          %886 = vmatpush1.msra.mxu0 0.0
          %887 = vmatprep.subr.mxu0 0.0
          %888 = vmatpush1.msra.mxu0 0.0
          %889 = vmatprep.subr.mxu0 0.0
          %890 = vmatpush1.msra.mxu0 0.0
          %891 = vmatprep.subr.mxu0 0.0
          %892 = vmatpush1.msra.mxu0 0.0
          %893 = vmatprep.subr.mxu0 0.0
          %894 = vmatpush1.msra.mxu0 0.0
          %895 = vmatprep.subr.mxu0 0.0
          %896 = vmatpush1.msra.mxu0 0.0
          %897 = vmatprep.mubr.f32.mxu0 0.0
          %898 = vmatmul.mubr.f32.gmra.mrb[0].mxu0 %v800
          %v899 = vpop.f32.mrb[0].mxu0
          %v900 = vadd.f32 0.0, %v899
          %v901 = vpop.f32.mrb[0].mxu0
          %v902 = vadd.f32 0.0, %v901
          %903 = vdwg.mxu0
          %904 = vmatprep.subr.mxu0 %v769
          %905 = vmatpush1.msra.mxu0 %v768
          %906 = vmatprep.subr.mxu0 %v771
          %907 = vmatpush1.msra.mxu0 %v770
          %908 = vmatprep.subr.mxu0 %v773
          %909 = vmatpush1.msra.mxu0 %v772
          %910 = vmatprep.subr.mxu0 %v775
          %911 = vmatpush1.msra.mxu0 %v774
          %912 = vmatprep.subr.mxu0 %v777
          %913 = vmatpush1.msra.mxu0 %v776
          %914 = vmatprep.subr.mxu0 %v779
          %915 = vmatpush1.msra.mxu0 %v778
          %916 = vmatprep.subr.mxu0 %v781
          %917 = vmatpush1.msra.mxu0 %v780
          %918 = vmatprep.subr.mxu0 %v783
          %919 = vmatpush1.msra.mxu0 %v782
          %920 = vmatprep.subr.mxu0 %v785
          %921 = vmatpush1.msra.mxu0 %v784
          %922 = vmatprep.subr.mxu0 %v787
          %923 = vmatpush1.msra.mxu0 %v786
          %924 = vmatprep.subr.mxu0 %v789
          %925 = vmatpush1.msra.mxu0 %v788
          %926 = vmatprep.subr.mxu0 %v791
          %927 = vmatpush1.msra.mxu0 %v790
          %928 = vmatprep.subr.mxu0 %v793
          %929 = vmatpush1.msra.mxu0 %v792
          %930 = vmatprep.subr.mxu0 %v795
          %931 = vmatpush1.msra.mxu0 %v794
          %932 = vmatprep.subr.mxu0 %v797
          %933 = vmatpush1.msra.mxu0 %v796
          %934 = vmatprep.subr.mxu0 %v799
          %935 = vmatpush1.msra.mxu0 %v798
          %936 = vmatprep.subr.mxu0 0.0
          %937 = vmatpush1.msra.mxu0 0.0
          %938 = vmatprep.subr.mxu0 0.0
          %939 = vmatpush1.msra.mxu0 0.0
          %940 = vmatprep.subr.mxu0 0.0
          %941 = vmatpush1.msra.mxu0 0.0
          %942 = vmatprep.subr.mxu0 0.0
          %943 = vmatpush1.msra.mxu0 0.0
          %944 = vmatprep.subr.mxu0 0.0
          %945 = vmatpush1.msra.mxu0 0.0
          %946 = vmatprep.subr.mxu0 0.0
          %947 = vmatpush1.msra.mxu0 0.0
          %948 = vmatprep.subr.mxu0 0.0
          %949 = vmatpush1.msra.mxu0 0.0
          %950 = vmatprep.subr.mxu0 0.0
          %951 = vmatpush1.msra.mxu0 0.0
          %952 = vmatprep.subr.mxu0 0.0
          %953 = vmatpush1.msra.mxu0 0.0
          %954 = vmatprep.subr.mxu0 0.0
          %955 = vmatpush1.msra.mxu0 0.0
          %956 = vmatprep.subr.mxu0 0.0
          %957 = vmatpush1.msra.mxu0 0.0
          %958 = vmatprep.subr.mxu0 0.0
          %959 = vmatpush1.msra.mxu0 0.0
          %960 = vmatprep.subr.mxu0 0.0
          %961 = vmatpush1.msra.mxu0 0.0
          %962 = vmatprep.subr.mxu0 0.0
          %963 = vmatpush1.msra.mxu0 0.0
          %964 = vmatprep.subr.mxu0 0.0
          %965 = vmatpush1.msra.mxu0 0.0
          %966 = vmatprep.subr.mxu0 0.0
          %967 = vmatpush1.msra.mxu0 0.0
          %968 = vmatprep.mubr.f32.mxu0 0.0
          %969 = vmatmul.mubr.f32.gmra.mrb[0].mxu0 %v767
          %v970 = vpop.f32.mrb[0].mxu0
          %v971 = vadd.f32 %v900, %v970
          %v972 = vpop.f32.mrb[0].mxu0
          %v973 = vadd.f32 %v902, %v972
          %974 = vdwg.mxu0
          %v975 = vld [vmem:[%s8] sm:$0x3]
          %v977 = vlaneseq
          %v978 = vshrl.u32 %v977, 7
          %v979 = vsub.s32 0, %v978
          %v980 = vrot.slane %v975, %v979
          %v981 = vlaneseq
          %v982 = vshrl.u32 %v981, 7
          %v983 = vsub.s32 1, %v982
          %v984 = vrot.slane %v975, %v983
          %v987 = vadd.f32 %v971, %v980
          %v988 = vadd.f32 %v973, %v984
          %v989 = vmax.f32 %v987, 0.0
          %v990 = vmax.f32 %v988, 0.0
          %v991 = vld [vmem:[#allocation13] sm:$0xff]
          %v992 = vld [vmem:[#allocation13 + $0x8] sm:$0xff]
          %v993 = vld [vmem:[#allocation13 + $0x10] sm:$0xff]
          %v994 = vld [vmem:[#allocation13 + $0x18] sm:$0xff]
          %v995 = vld [vmem:[#allocation13 + $0x20] sm:$0xff]
          %v996 = vld [vmem:[#allocation13 + $0x28] sm:$0xff]
          %v997 = vld [vmem:[#allocation13 + $0x30] sm:$0xff]
          %v998 = vld [vmem:[#allocation13 + $0x38] sm:$0xff]
          %v999 = vld [vmem:[#allocation13 + $0x40] sm:$0xff]
          %v1000 = vld [vmem:[#allocation13 + $0x48] sm:$0xff]
          %v1001 = vld [vmem:[#allocation13 + $0x50] sm:$0xff]
          %v1002 = vld [vmem:[#allocation13 + $0x58] sm:$0xff]
          %v1003 = vld [vmem:[#allocation13 + $0x60] sm:$0xff]
          %v1004 = vld [vmem:[#allocation13 + $0x68] sm:$0xff]
          %v1005 = vld [vmem:[#allocation13 + $0x70] sm:$0xff]
          %v1006 = vld [vmem:[#allocation13 + $0x78] sm:$0xff]
          %v1007 = vld [vmem:[%s10] sm:$0x1]
          %v1009 = vlaneseq
          %v1010 = vshrl.u32 %v1009, 7
          %v1011 = vsub.s32 0, %v1010
          %v1012 = vrot.slane %v1007, %v1011
          %1014 = vmatprep.subr.mxu0 0.0
          %1015 = vmatpush1.msra.mxu0 %v991
          %1016 = vmatprep.subr.mxu0 0.0
          %1017 = vmatpush1.msra.mxu0 %v992
          %1018 = vmatprep.subr.mxu0 0.0
          %1019 = vmatpush1.msra.mxu0 %v993
          %1020 = vmatprep.subr.mxu0 0.0
          %1021 = vmatpush1.msra.mxu0 %v994
          %1022 = vmatprep.subr.mxu0 0.0
          %1023 = vmatpush1.msra.mxu0 %v995
          %1024 = vmatprep.subr.mxu0 0.0
          %1025 = vmatpush1.msra.mxu0 %v996
          %1026 = vmatprep.subr.mxu0 0.0
          %1027 = vmatpush1.msra.mxu0 %v997
          %1028 = vmatprep.subr.mxu0 0.0
          %1029 = vmatpush1.msra.mxu0 %v998
          %1030 = vmatprep.subr.mxu0 0.0
          %1031 = vmatpush1.msra.mxu0 %v999
          %1032 = vmatprep.subr.mxu0 0.0
          %1033 = vmatpush1.msra.mxu0 %v1000
          %1034 = vmatprep.subr.mxu0 0.0
          %1035 = vmatpush1.msra.mxu0 %v1001
          %1036 = vmatprep.subr.mxu0 0.0
          %1037 = vmatpush1.msra.mxu0 %v1002
          %1038 = vmatprep.subr.mxu0 0.0
          %1039 = vmatpush1.msra.mxu0 %v1003
          %1040 = vmatprep.subr.mxu0 0.0
          %1041 = vmatpush1.msra.mxu0 %v1004
          %1042 = vmatprep.subr.mxu0 0.0
          %1043 = vmatpush1.msra.mxu0 %v1005
          %1044 = vmatprep.subr.mxu0 0.0
          %1045 = vmatpush1.msra.mxu0 %v1006
          %1046 = vmatprep.subr.mxu0 0.0
          %1047 = vmatpush1.msra.mxu0 0.0
          %1048 = vmatprep.subr.mxu0 0.0
          %1049 = vmatpush1.msra.mxu0 0.0
          %1050 = vmatprep.subr.mxu0 0.0
          %1051 = vmatpush1.msra.mxu0 0.0
          %1052 = vmatprep.subr.mxu0 0.0
          %1053 = vmatpush1.msra.mxu0 0.0
          %1054 = vmatprep.subr.mxu0 0.0
          %1055 = vmatpush1.msra.mxu0 0.0
          %1056 = vmatprep.subr.mxu0 0.0
          %1057 = vmatpush1.msra.mxu0 0.0
          %1058 = vmatprep.subr.mxu0 0.0
          %1059 = vmatpush1.msra.mxu0 0.0
          %1060 = vmatprep.subr.mxu0 0.0
          %1061 = vmatpush1.msra.mxu0 0.0
          %1062 = vmatprep.subr.mxu0 0.0
          %1063 = vmatpush1.msra.mxu0 0.0
          %1064 = vmatprep.subr.mxu0 0.0
          %1065 = vmatpush1.msra.mxu0 0.0
          %1066 = vmatprep.subr.mxu0 0.0
          %1067 = vmatpush1.msra.mxu0 0.0
          %1068 = vmatprep.subr.mxu0 0.0
          %1069 = vmatpush1.msra.mxu0 0.0
          %1070 = vmatprep.subr.mxu0 0.0
          %1071 = vmatpush1.msra.mxu0 0.0
          %1072 = vmatprep.subr.mxu0 0.0
          %1073 = vmatpush1.msra.mxu0 0.0
          %1074 = vmatprep.subr.mxu0 0.0
          %1075 = vmatpush1.msra.mxu0 0.0
          %1076 = vmatprep.subr.mxu0 0.0
          %1077 = vmatpush1.msra.mxu0 0.0
          %1078 = vmatprep.mubr.f32.mxu0 0.0
          %1079 = vmatmul.mubr.f32.gmra.mrb[0].mxu0 %v989
          %v1080 = vpop.f32.mrb[0].mxu0
          %v1081 = vadd.f32 %v1012, %v1080
          %v1082 = vpop.f32.mrb[0].mxu0
          %1083 = vdwg.mxu0
          %v1084 = vmax.f32 %v1081, 0.0
          %v1085 = vld [vmem:[#allocation15] sm:$0xff]
          %v1086 = vld [vmem:[#allocation15 + $0x8] sm:$0xff]
          %v1087 = vld [vmem:[#allocation15 + $0x10] sm:$0xff]
          %v1088 = vld [vmem:[#allocation15 + $0x18] sm:$0xff]
          %v1089 = vld [vmem:[#allocation15 + $0x20] sm:$0xff]
          %v1090 = vld [vmem:[#allocation15 + $0x28] sm:$0xff]
          %v1091 = vld [vmem:[#allocation15 + $0x30] sm:$0xff]
          %v1092 = vld [vmem:[#allocation15 + $0x38] sm:$0xff]
          %v1093 = vld [vmem:[#allocation15 + $0x40] sm:$0xff]
          %v1094 = vld [vmem:[#allocation15 + $0x48] sm:$0xff]
          %v1095 = vld [vmem:[#allocation15 + $0x50] sm:$0xff]
          %v1096 = vld [vmem:[#allocation15 + $0x58] sm:$0xff]
          %v1097 = vld [vmem:[#allocation15 + $0x60] sm:$0xff]
          %v1098 = vld [vmem:[#allocation15 + $0x68] sm:$0xff]
          %v1099 = vld [vmem:[#allocation15 + $0x70] sm:$0xff]
          %v1100 = vld [vmem:[#allocation15 + $0x78] sm:$0xff]
          %v1101 = vld [vmem:[%s12] sm:$0x1]
          %v1103 = vlaneseq
          %v1104 = vshrl.u32 %v1103, 7
          %v1105 = vsub.s32 0, %v1104
          %v1106 = vrot.slane %v1101, %v1105
          %1108 = vmatprep.subr.mxu0 0.0
          %1109 = vmatpush1.msra.mxu0 %v1085
          %1110 = vmatprep.subr.mxu0 0.0
          %1111 = vmatpush1.msra.mxu0 %v1086
          %1112 = vmatprep.subr.mxu0 0.0
          %1113 = vmatpush1.msra.mxu0 %v1087
          %1114 = vmatprep.subr.mxu0 0.0
          %1115 = vmatpush1.msra.mxu0 %v1088
          %1116 = vmatprep.subr.mxu0 0.0
          %1117 = vmatpush1.msra.mxu0 %v1089
          %1118 = vmatprep.subr.mxu0 0.0
          %1119 = vmatpush1.msra.mxu0 %v1090
          %1120 = vmatprep.subr.mxu0 0.0
          %1121 = vmatpush1.msra.mxu0 %v1091
          %1122 = vmatprep.subr.mxu0 0.0
          %1123 = vmatpush1.msra.mxu0 %v1092
          %1124 = vmatprep.subr.mxu0 0.0
          %1125 = vmatpush1.msra.mxu0 %v1093
          %1126 = vmatprep.subr.mxu0 0.0
          %1127 = vmatpush1.msra.mxu0 %v1094
          %1128 = vmatprep.subr.mxu0 0.0
          %1129 = vmatpush1.msra.mxu0 %v1095
          %1130 = vmatprep.subr.mxu0 0.0
          %1131 = vmatpush1.msra.mxu0 %v1096
          %1132 = vmatprep.subr.mxu0 0.0
          %1133 = vmatpush1.msra.mxu0 %v1097
          %1134 = vmatprep.subr.mxu0 0.0
          %1135 = vmatpush1.msra.mxu0 %v1098
          %1136 = vmatprep.subr.mxu0 0.0
          %1137 = vmatpush1.msra.mxu0 %v1099
          %1138 = vmatprep.subr.mxu0 0.0
          %1139 = vmatpush1.msra.mxu0 %v1100
          %1140 = vmatprep.subr.mxu0 0.0
          %1141 = vmatpush1.msra.mxu0 0.0
          %1142 = vmatprep.subr.mxu0 0.0
          %1143 = vmatpush1.msra.mxu0 0.0
          %1144 = vmatprep.subr.mxu0 0.0
          %1145 = vmatpush1.msra.mxu0 0.0
          %1146 = vmatprep.subr.mxu0 0.0
          %1147 = vmatpush1.msra.mxu0 0.0
          %1148 = vmatprep.subr.mxu0 0.0
          %1149 = vmatpush1.msra.mxu0 0.0
          %1150 = vmatprep.subr.mxu0 0.0
          %1151 = vmatpush1.msra.mxu0 0.0
          %1152 = vmatprep.subr.mxu0 0.0
          %1153 = vmatpush1.msra.mxu0 0.0
          %1154 = vmatprep.subr.mxu0 0.0
          %1155 = vmatpush1.msra.mxu0 0.0
          %1156 = vmatprep.subr.mxu0 0.0
          %1157 = vmatpush1.msra.mxu0 0.0
          %1158 = vmatprep.subr.mxu0 0.0
          %1159 = vmatpush1.msra.mxu0 0.0
          %1160 = vmatprep.subr.mxu0 0.0
          %1161 = vmatpush1.msra.mxu0 0.0
          %1162 = vmatprep.subr.mxu0 0.0
          %1163 = vmatpush1.msra.mxu0 0.0
          %1164 = vmatprep.subr.mxu0 0.0
          %1165 = vmatpush1.msra.mxu0 0.0
          %1166 = vmatprep.subr.mxu0 0.0
          %1167 = vmatpush1.msra.mxu0 0.0
          %1168 = vmatprep.subr.mxu0 0.0
          %1169 = vmatpush1.msra.mxu0 0.0
          %1170 = vmatprep.subr.mxu0 0.0
          %1171 = vmatpush1.msra.mxu0 0.0
          %1172 = vmatprep.mubr.f32.mxu0 0.0
          %1173 = vmatmul.mubr.f32.gmra.mrb[0].mxu0 %v990
          %v1174 = vpop.f32.mrb[0].mxu0
          %v1175 = vadd.f32 %v1106, %v1174
          %v1176 = vpop.f32.mrb[0].mxu0
          %1177 = vdwg.mxu0
          %v1178 = vmax.f32 %v1175, 0.0
          %v1179 = vld [vmem:[%s13] sm:$0x1]
          %v1180 = vlaneseq
          %v1181 = vshrl.u32 %v1180, 7
          %v1182 = vsub.s32 0, %v1181
          %v1183 = vrot.slane %v1179, %v1182
          %v1184 = vmul.f32 %v1084, %v1183
          %1185 = vadd.xlane.f32.xlu0 %v1184
          %v1186 = vpop.xlane.xlu0 %1185
          %s1187 = sld [smem:[#allocation16]]
          %v1188 = vstv %s1187
          %v1189 = vadd.f32 %v1186, %v1188
          %v1190 = vld [vmem:[%s13 + $0x1] sm:$0x1]
          %v1191 = vlaneseq
          %v1192 = vshrl.u32 %v1191, 7
          %v1193 = vsub.s32 0, %v1192
          %v1194 = vrot.slane %v1190, %v1193
          %v1195 = vmul.f32 %v1178, %v1194
          %1196 = vadd.xlane.f32.xlu0 %v1195
          %v1197 = vpop.xlane.xlu0 %1196
          %s1198 = sld [smem:[#allocation16 + $0x1]]
          %v1199 = vstv %s1198
          %v1200 = vadd.f32 %v1197, %v1199
          %vm1201 = vcmp.eq.s32.totalorder %v740, 0
          %vm1202 = vcmp.eq.s32.totalorder %v740, 1
          %v1203 = vsel %vm1202, %v1200, 0.0
          %v1204 = vsel %vm1201, %v1189, %v1203
          %1205 = vst [vmem:[#allocation17] sm:$0xff] %v1204
        $region120: #{tpu_custom_call.1} parent=79 // pred_fallthru
          _
        // Predicated region
        $region121: #{tpu_custom_call.1} parent=79 // pred_check
          %p1206 = pneg %p391
        $region122: #{tpu_custom_call.1} parent=79 // pred_check_branch
          %1208 = sbr.rel (%p1206) target = $region124
        $region123: #{tpu_custom_call.1} parent=79 // pred_region
          %s1210 = ssub.s32 128, 128
          %1211 = vsyncadd [#allocation5], %s1210
          %s1212 = smul.addr %s38, 128
          %s1213 = scalar_lea.hbm %s15, %s1212
          %s1215 = sshll.u32 [#allocation17], 4
          %s1216 = int_to_ptr.vmem [resolvable:$true] %s1215
          %1218 = dma.vmem_to_hbm [thread:$0]  %s1216, 128, %s1213, [#allocation5]
        $region124: #{tpu_custom_call.1} parent=79 // pred_fallthru
          _
        // Predicated region
        $region125: #{tpu_custom_call.1} parent=79 // pred_check
          %p1219 = pneg %p391
        $region126: #{tpu_custom_call.1} parent=79 // pred_check_branch
          %1221 = sbr.rel (%p1219) target = $region128
        $region127: #{tpu_custom_call.1} parent=79 // pred_region
          %1222 = dma.done [#allocation5], 128
        $region128: #{tpu_custom_call.1} parent=79 // pred_fallthru
          _
      $region80: #{tpu_custom_call.1} parent=5 // pred_fallthru
        _
      %p1223 = scmp.le.s32.totalorder 2, %s29
      // Predicated region
      $region129: #{tpu_custom_call.1} parent=5 // pred_check
        %p1224 = pneg %p1223
      $region130: #{tpu_custom_call.1} parent=5 // pred_check_branch
        %1226 = sbr.rel (%p1224) target = $region132
      $region131: #{tpu_custom_call.1} parent=5 // pred_region
        %s1227 = ssub.s32 %s29, 2
      $region132: #{tpu_custom_call.1} parent=5 // pred_fallthru
        _
    $region6: #{tpu_custom_call.1} parent=1 // loop_footer
      %s33 = sadd.s32 1, %s29
    $region7: #{tpu_custom_call.1} parent=1 // loop_footer_branch
      %28 = sbr.rel target = $region3
    $region8: #{tpu_custom_call.1} parent=1 // loop_exit
      _
    %1228 = vsyncpa [#allocation4], 1
    %s1229 = scalar_lea.sflag [#allocation4], 1
    %1230 = vsyncpa %s1229, 1
    %1231 = vsyncpa [#allocation8], 1
    %1232 = vsyncpa [#allocation11], 1
    %1233 = vsyncpa [#allocation14], 1
    %1234 = vsyncpa [#allocation5], 1
    %s1235 = scalar_lea.sflag [#allocation5], 1
    %1236 = vsyncpa %s1235, 1
    %1237 = vsyncpa [#allocation6], 1
    %s1238 = scalar_lea.sflag [#allocation6], 1
    %1239 = vsyncpa %s1238, 1

</llo_original>
